<compile_context>
chip_gen: v5e
topology: v5e:2x2
jax: 0.10.0
libtpu: 0.0.40
codegen_flags: <defaults>
</compile_context>

<pallas_src>
import functools
import math

import jax
import jax.numpy as jnp
from jax.experimental import pallas as pl
from jax.experimental.pallas import tpu as pltpu


# ----------------------------------------------------------------------------
# Fused forward-pass kernel
# ----------------------------------------------------------------------------

def _fused_forward_kernel(*refs, B, S, D, n_heads, n_layers, n_mlp,
                          causal, attn_act, ff_act, eps):
    """Whole AttentionMLP forward on VMEM-resident data.

    Ref order (inputs then output):
      seq (B*S, Fin), features (B, E), emb_w, emb_b,
      per layer: wqkv, bqkv, wo, bo, w1, b1, w2, b2, ln1_g, ln1_b, ln2_g, ln2_b,
      per mlp layer: w, b,
      out (B, output_size)
    """
    it = iter(refs)
    seq_ref = next(it)          # (B*S, Fin)
    feat_ref = next(it)         # (B, E)
    emb_w = next(it)
    emb_b = next(it)
    layer_refs = [tuple(next(it) for _ in range(12)) for _ in range(n_layers)]
    mlp_refs = [(next(it), next(it)) for _ in range(n_mlp)]
    out_ref = next(it)

    dh = D // n_heads
    scale = 1.0 / math.sqrt(dh)

    def act(y, name):
        if name == "relu":
            return jnp.maximum(y, 0.0)
        return y

    def dense(x, w_ref, b_ref, name=None):
        y = jnp.dot(x, w_ref[...], preferred_element_type=jnp.float32) + b_ref[...]
        return act(y, name)

    def ln_res(x, y, g_ref, b_ref):
        z = x + y
        mu = jnp.mean(z, axis=-1, keepdims=True)
        var = jnp.mean((z - mu) ** 2, axis=-1, keepdims=True)
        zn = (z - mu) * jax.lax.rsqrt(var + eps)
        return zn * g_ref[...] + b_ref[...]

    # Additive causal mask (MultiHeadAttention.gen_history_mask), hoisted out of all loops.
    # Large finite negative instead of -inf (NaN-safe if a row were ever fully masked).
    if causal:
        rr = jax.lax.broadcasted_iota(jnp.int32, (S, S), 0)
        cc = jax.lax.broadcasted_iota(jnp.int32, (S, S), 1)
        neg_mask = jnp.where(cc <= rr, 0.0, -1e30).astype(jnp.float32)
    else:
        neg_mask = None

    # ---- embedder: Linear + ReLU -------------------------------------------
    x = dense(seq_ref[...], emb_w, emb_b, "relu")        # (B*S, D)

    # ---- transformer encoder stack (unrolled) ------------------------------
    for (wqkv, bqkv, wo, bo, w1, b1, w2, b2,
         ln1_g, ln1_b, ln2_g, ln2_b) in layer_refs:
        # fused q/k/v projection: one MXU push, static lane-slice split
        qkv = dense(x, wqkv, bqkv, attn_act)             # (B*S, 3D)
        q = qkv[:, 0:D]
        k = qkv[:, D:2 * D]
        v = qkv[:, 2 * D:3 * D]

        batch_outs = []
        for b in range(B):
            r0, r1 = b * S, (b + 1) * S
            head_outs = []
            for h in range(n_heads):
                c0, c1 = h * dh, (h + 1) * dh
                qb = q[r0:r1, c0:c1]                     # (S, dh), static slices
                kb = k[r0:r1, c0:c1]
                vb = v[r0:r1, c0:c1]
                # q @ k^T without an explicit transpose (contract last dims)
                s = jax.lax.dot_general(
                    qb, kb, (((1,), (1,)), ((), ())),
                    preferred_element_type=jnp.float32) * scale
                if neg_mask is not None:
                    s = s + neg_mask
                s = s - jnp.max(s, axis=-1, keepdims=True)
                p = jnp.exp(s)
                p = p * pl.reciprocal(jnp.sum(p, axis=-1, keepdims=True), approx=True)
                head_outs.append(
                    jnp.dot(p, vb, preferred_element_type=jnp.float32))
            batch_outs.append(jnp.concatenate(head_outs, axis=-1))   # (S, D)
        attn = jnp.concatenate(batch_outs, axis=0)                   # (B*S, D)

        attn = dense(attn, wo, bo, attn_act)             # output projection
        x1 = ln_res(x, attn, ln1_g, ln1_b)               # residual + LayerNorm
        hmid = dense(x1, w1, b1, ff_act)                 # FeedForward
        ff = dense(hmid, w2, b2, None)
        x = ln_res(x1, ff, ln2_g, ln2_b)                 # residual + LayerNorm

    # ---- reduction: mean over sequence (dim=1) ------------------------------
    enc = jnp.concatenate(
        [jnp.mean(x[b * S:(b + 1) * S, :], axis=0, keepdims=True) for b in range(B)],
        axis=0)                                          # (B, D)

    # ---- MLP head on concat(encoded, features) ------------------------------
    h = jnp.concatenate([enc, feat_ref[...]], axis=-1)   # (B, D + E)
    for i, (w, bia) in enumerate(mlp_refs):
        name = ff_act if i < n_mlp - 1 else None         # activation on hidden layers only
        h = dense(h, w, bia, name)

    out_ref[...] = h.astype(out_ref.dtype)


# ----------------------------------------------------------------------------
# Wrapper: flatten params, one pallas_call, whole problem resident in VMEM
# ----------------------------------------------------------------------------

def attention_mlp_forward(sequence, features, params, cfg):
    B, S, Fin = sequence.shape
    D = cfg["n_heads"] * cfg["features_per_head"]
    n_layers = len(params["encoder_layers"])
    n_mlp = len(params["mlp"])

    inputs = [
        sequence.reshape(B * S, Fin),
        features,
        params["emb_w"], params["emb_b"].reshape(1, -1),
    ]
    for lp in params["encoder_layers"]:
        inputs += [
            lp["wqkv"], lp["bqkv"].reshape(1, -1),
            lp["wo"], lp["bo"].reshape(1, -1),
            lp["w1"], lp["b1"].reshape(1, -1),
            lp["w2"], lp["b2"].reshape(1, -1),
            lp["ln1_g"].reshape(1, -1), lp["ln1_b"].reshape(1, -1),
            lp["ln2_g"].reshape(1, -1), lp["ln2_b"].reshape(1, -1),
        ]
    for w, b in params["mlp"]:
        inputs += [w, b.reshape(1, -1)]

    kernel = functools.partial(
        _fused_forward_kernel,
        B=B, S=S, D=D,
        n_heads=cfg["n_heads"], n_layers=n_layers, n_mlp=n_mlp,
        causal=cfg["use_mask"],
        attn_act=cfg["attention_activation"], ff_act=cfg["mlp_activation"],
        eps=1e-5,
    )

    out = pl.pallas_call(
        kernel,
        out_shape=jax.ShapeDtypeStruct((B, cfg["output_size"]), sequence.dtype),
        # No grid / no BlockSpecs: every operand is a single whole-array VMEM block.
        compiler_params=pltpu.CompilerParams(vmem_limit_bytes=32 * 1024 * 1024),
    )(*inputs)

    return jnp.squeeze(out)


# ----------------------------------------------------------------------------
# Deterministic parameter initialization (PyTorch nn.Linear-style uniform)
# ----------------------------------------------------------------------------

def dense_init(key, fan_in, fan_out):
    k1, k2 = jax.random.split(key)
    bound = 1.0 / math.sqrt(fan_in)
    w = jax.random.uniform(k1, (fan_in, fan_out), jnp.float32, -bound, bound)
    b = jax.random.uniform(k2, (fan_out,), jnp.float32, -bound, bound)
    return w, b


def init_params(key, cfg):
    D = cfg["n_heads"] * cfg["features_per_head"]
    Hff = cfg["attention_hidden_features"]
    keys = jax.random.split(key, 3 + cfg["n_layers"])

    emb_w, emb_b = dense_init(keys[0], cfg["in_features"], D)

    enc_layers = []
    for li in range(cfg["n_layers"]):
        ks = jax.random.split(keys[1 + li], 6)
        wq, bq = dense_init(ks[0], D, D)
        wk, bk = dense_init(ks[1], D, D)
        wv, bv = dense_init(ks[2], D, D)
        wo, bo = dense_init(ks[3], D, D)
        w1, b1 = dense_init(ks[4], D, Hff)
        w2, b2 = dense_init(ks[5], Hff, D)
        enc_layers.append(dict(
            # fused q/k/v weight & bias for a single MXU push
            wqkv=jnp.concatenate([wq, wk, wv], axis=1),
            bqkv=jnp.concatenate([bq, bk, bv], axis=0),
            wo=wo, bo=bo,
            w1=w1, b1=b1, w2=w2, b2=b2,
            ln1_g=jnp.ones((D,), jnp.float32), ln1_b=jnp.zeros((D,), jnp.float32),
            ln2_g=jnp.ones((D,), jnp.float32), ln2_b=jnp.zeros((D,), jnp.float32),
        ))

    mlp_sizes = ([D + cfg["mlp_extra_input_size"]]
                 + [cfg["mlp_hidden_layer_size"]] * cfg["mlp_n_hidden_layers"]
                 + [cfg["output_size"]])
    mlp = []
    mk = jax.random.split(keys[-1], len(mlp_sizes) - 1)
    for i in range(len(mlp_sizes) - 1):
        mlp.append(dense_init(mk[i], mlp_sizes[i], mlp_sizes[i + 1]))

    return dict(emb_w=emb_w, emb_b=emb_b, encoder_layers=enc_layers, mlp=mlp)


# ----------------------------------------------------------------------------
# Main
# ----------------------------------------------------------------------------

if __name__ == "__main__":
    cfg = dict(
        n_layers=2,
        n_heads=2,
        in_features=6,
        features_per_head=8,            # attention_in_features = 16
        attention_hidden_features=32,
        attention_activation="relu",
        mlp_activation="relu",
        use_mask=True,                  # causal "history" mask
        mlp_extra_input_size=4,
        mlp_hidden_layer_size=32,
        mlp_n_hidden_layers=2,
        output_size=3,
    )

    B, S = 2, 8
    key = jax.random.PRNGKey(0)
    kp, ks, kf = jax.random.split(key, 3)
    params = init_params(kp, cfg)
    sequence = jax.random.normal(ks, (B, S, cfg["in_features"]), jnp.float32)
    features = jax.random.normal(kf, (B, cfg["mlp_extra_input_size"]), jnp.float32)

    out = attention_mlp_forward(sequence, features, params, cfg)
    out = jax.block_until_ready(out)
    assert out.shape == (B, cfg["output_size"]), out.shape
    assert bool(jnp.all(jnp.isfinite(out)))
    print("KERNEL_OK")
</pallas_src>

<mosaic_0001>
module attributes {stable_mosaic.version = 11 : i64} {
  func.func @_fused_forward_kernel(%arg0: memref<16x6xf32, #tpu.memory_space<vmem>>, %arg1: memref<2x4xf32, #tpu.memory_space<vmem>>, %arg2: memref<6x16xf32, #tpu.memory_space<vmem>>, %arg3: memref<1x16xf32, #tpu.memory_space<vmem>>, %arg4: memref<16x48xf32, #tpu.memory_space<vmem>>, %arg5: memref<1x48xf32, #tpu.memory_space<vmem>>, %arg6: memref<16x16xf32, #tpu.memory_space<vmem>>, %arg7: memref<1x16xf32, #tpu.memory_space<vmem>>, %arg8: memref<16x32xf32, #tpu.memory_space<vmem>>, %arg9: memref<1x32xf32, #tpu.memory_space<vmem>>, %arg10: memref<32x16xf32, #tpu.memory_space<vmem>>, %arg11: memref<1x16xf32, #tpu.memory_space<vmem>>, %arg12: memref<1x16xf32, #tpu.memory_space<vmem>>, %arg13: memref<1x16xf32, #tpu.memory_space<vmem>>, %arg14: memref<1x16xf32, #tpu.memory_space<vmem>>, %arg15: memref<1x16xf32, #tpu.memory_space<vmem>>, %arg16: memref<16x48xf32, #tpu.memory_space<vmem>>, %arg17: memref<1x48xf32, #tpu.memory_space<vmem>>, %arg18: memref<16x16xf32, #tpu.memory_space<vmem>>, %arg19: memref<1x16xf32, #tpu.memory_space<vmem>>, %arg20: memref<16x32xf32, #tpu.memory_space<vmem>>, %arg21: memref<1x32xf32, #tpu.memory_space<vmem>>, %arg22: memref<32x16xf32, #tpu.memory_space<vmem>>, %arg23: memref<1x16xf32, #tpu.memory_space<vmem>>, %arg24: memref<1x16xf32, #tpu.memory_space<vmem>>, %arg25: memref<1x16xf32, #tpu.memory_space<vmem>>, %arg26: memref<1x16xf32, #tpu.memory_space<vmem>>, %arg27: memref<1x16xf32, #tpu.memory_space<vmem>>, %arg28: memref<20x32xf32, #tpu.memory_space<vmem>>, %arg29: memref<1x32xf32, #tpu.memory_space<vmem>>, %arg30: memref<32x32xf32, #tpu.memory_space<vmem>>, %arg31: memref<1x32xf32, #tpu.memory_space<vmem>>, %arg32: memref<32x3xf32, #tpu.memory_space<vmem>>, %arg33: memref<1x3xf32, #tpu.memory_space<vmem>>, %arg34: memref<2x3xf32, #tpu.memory_space<vmem>>) attributes {dimension_semantics = [], scalar_prefetch = 0 : i64, scratch_operands = 0 : i64, tpu.core_type = #tpu.core_type<tc>} {
    %0 = tpu.iota {dimensions = array<i32: 0>} : vector<8x8xi32>
    %1 = tpu.iota {dimensions = array<i32: 1>} : vector<8x8xi32>
    %2 = arith.cmpi sle, %1, %0 : vector<8x8xi32>
    %cst = arith.constant 0.000000e+00 : f32
    %cst_0 = arith.constant -1.000000e+30 : f32
    %3 = vector.broadcast %cst : f32 to vector<8x8xf32>
    %4 = vector.broadcast %cst_0 : f32 to vector<8x8xf32>
    %5 = arith.select %2, %3, %4 : vector<8x8xi1>, vector<8x8xf32>
    %c0 = arith.constant 0 : index
    %c0_1 = arith.constant 0 : index
    %6 = vector.load %arg0[%c0, %c0_1] : memref<16x6xf32, #tpu.memory_space<vmem>>, vector<16x6xf32>
    %c0_2 = arith.constant 0 : index
    %c0_3 = arith.constant 0 : index
    %7 = vector.load %arg2[%c0_2, %c0_3] : memref<6x16xf32, #tpu.memory_space<vmem>>, vector<6x16xf32>
    %cst_4 = arith.constant dense<0.000000e+00> : vector<16x16xf32>
    %8 = tpu.matmul %6, %7, %cst_4 {dimension_numbers = #tpu.dot_dimension_numbers<[1], [0], [0], [1], [0, 0, 1, 1], [], []>} : vector<16x6xf32>, vector<6x16xf32>, vector<16x16xf32> -> vector<16x16xf32>
    %c0_5 = arith.constant 0 : index
    %c0_6 = arith.constant 0 : index
    %9 = vector.load %arg3[%c0_5, %c0_6] : memref<1x16xf32, #tpu.memory_space<vmem>>, vector<1x16xf32>
    %10 = vector.broadcast %9 : vector<1x16xf32> to vector<16x16xf32>
    %11 = arith.addf %8, %10 : vector<16x16xf32>
    %cst_7 = arith.constant 0.000000e+00 : f32
    %12 = vector.broadcast %cst_7 : f32 to vector<16x16xf32>
    %13 = arith.maximumf %11, %12 : vector<16x16xf32>
    %c0_8 = arith.constant 0 : index
    %c0_9 = arith.constant 0 : index
    %14 = vector.load %arg4[%c0_8, %c0_9] : memref<16x48xf32, #tpu.memory_space<vmem>>, vector<16x48xf32>
    %cst_10 = arith.constant dense<0.000000e+00> : vector<16x48xf32>
    %15 = tpu.matmul %13, %14, %cst_10 {dimension_numbers = #tpu.dot_dimension_numbers<[1], [0], [0], [1], [0, 0, 1, 1], [], []>} : vector<16x16xf32>, vector<16x48xf32>, vector<16x48xf32> -> vector<16x48xf32>
    %c0_11 = arith.constant 0 : index
    %c0_12 = arith.constant 0 : index
    %16 = vector.load %arg5[%c0_11, %c0_12] : memref<1x48xf32, #tpu.memory_space<vmem>>, vector<1x48xf32>
    %17 = vector.broadcast %16 : vector<1x48xf32> to vector<16x48xf32>
    %18 = arith.addf %15, %17 : vector<16x48xf32>
    %cst_13 = arith.constant 0.000000e+00 : f32
    %19 = vector.broadcast %cst_13 : f32 to vector<16x48xf32>
    %20 = arith.maximumf %18, %19 : vector<16x48xf32>
    %21 = vector.extract_strided_slice %20 {offsets = [0, 0], sizes = [16, 16], strides = [1, 1]} : vector<16x48xf32> to vector<16x16xf32>
    %22 = vector.extract_strided_slice %20 {offsets = [0, 16], sizes = [16, 16], strides = [1, 1]} : vector<16x48xf32> to vector<16x16xf32>
    %23 = vector.extract_strided_slice %20 {offsets = [0, 32], sizes = [16, 16], strides = [1, 1]} : vector<16x48xf32> to vector<16x16xf32>
    %24 = vector.extract_strided_slice %21 {offsets = [0, 0], sizes = [8, 8], strides = [1, 1]} : vector<16x16xf32> to vector<8x8xf32>
    %25 = vector.extract_strided_slice %22 {offsets = [0, 0], sizes = [8, 8], strides = [1, 1]} : vector<16x16xf32> to vector<8x8xf32>
    %26 = vector.extract_strided_slice %23 {offsets = [0, 0], sizes = [8, 8], strides = [1, 1]} : vector<16x16xf32> to vector<8x8xf32>
    %cst_14 = arith.constant dense<0.000000e+00> : vector<8x8xf32>
    %27 = tpu.matmul %24, %25, %cst_14 {dimension_numbers = #tpu.dot_dimension_numbers<[1], [1], [0], [0], [0, 0, 1, 0], [], []>} : vector<8x8xf32>, vector<8x8xf32>, vector<8x8xf32> -> vector<8x8xf32>
    %cst_15 = arith.constant 0.353553385 : f32
    %28 = vector.broadcast %cst_15 : f32 to vector<8x8xf32>
    %29 = arith.mulf %27, %28 : vector<8x8xf32>
    %30 = arith.addf %29, %5 : vector<8x8xf32>
    %cst_16 = arith.constant dense<0xFF800000> : vector<8xf32>
    %31 = vector.multi_reduction <maximumf>, %30, %cst_16 [1] : vector<8x8xf32> to vector<8xf32>
    %32 = vector.shape_cast %31 : vector<8xf32> to vector<8x1xf32>
    %33 = vector.broadcast %32 : vector<8x1xf32> to vector<8x8xf32>
    %34 = arith.subf %30, %33 : vector<8x8xf32>
    %35 = math.exp %34 : vector<8x8xf32>
    %cst_17 = arith.constant dense<0.000000e+00> : vector<8xf32>
    %36 = vector.multi_reduction <add>, %35, %cst_17 [1] : vector<8x8xf32> to vector<8xf32>
    %37 = vector.shape_cast %36 : vector<8xf32> to vector<8x1xf32>
    %38 = tpu.reciprocal %37 {approx = true} : vector<8x1xf32> -> vector<8x1xf32>
    %39 = vector.broadcast %38 : vector<8x1xf32> to vector<8x8xf32>
    %40 = arith.mulf %35, %39 : vector<8x8xf32>
    %cst_18 = arith.constant dense<0.000000e+00> : vector<8x8xf32>
    %41 = tpu.matmul %40, %26, %cst_18 {dimension_numbers = #tpu.dot_dimension_numbers<[1], [0], [0], [1], [0, 0, 1, 1], [], []>} : vector<8x8xf32>, vector<8x8xf32>, vector<8x8xf32> -> vector<8x8xf32>
    %42 = vector.extract_strided_slice %21 {offsets = [0, 8], sizes = [8, 8], strides = [1, 1]} : vector<16x16xf32> to vector<8x8xf32>
    %43 = vector.extract_strided_slice %22 {offsets = [0, 8], sizes = [8, 8], strides = [1, 1]} : vector<16x16xf32> to vector<8x8xf32>
    %44 = vector.extract_strided_slice %23 {offsets = [0, 8], sizes = [8, 8], strides = [1, 1]} : vector<16x16xf32> to vector<8x8xf32>
    %cst_19 = arith.constant dense<0.000000e+00> : vector<8x8xf32>
    %45 = tpu.matmul %42, %43, %cst_19 {dimension_numbers = #tpu.dot_dimension_numbers<[1], [1], [0], [0], [0, 0, 1, 0], [], []>} : vector<8x8xf32>, vector<8x8xf32>, vector<8x8xf32> -> vector<8x8xf32>
    %cst_20 = arith.constant 0.353553385 : f32
    %46 = vector.broadcast %cst_20 : f32 to vector<8x8xf32>
    %47 = arith.mulf %45, %46 : vector<8x8xf32>
    %48 = arith.addf %47, %5 : vector<8x8xf32>
    %cst_21 = arith.constant dense<0xFF800000> : vector<8xf32>
    %49 = vector.multi_reduction <maximumf>, %48, %cst_21 [1] : vector<8x8xf32> to vector<8xf32>
    %50 = vector.shape_cast %49 : vector<8xf32> to vector<8x1xf32>
    %51 = vector.broadcast %50 : vector<8x1xf32> to vector<8x8xf32>
    %52 = arith.subf %48, %51 : vector<8x8xf32>
    %53 = math.exp %52 : vector<8x8xf32>
    %cst_22 = arith.constant dense<0.000000e+00> : vector<8xf32>
    %54 = vector.multi_reduction <add>, %53, %cst_22 [1] : vector<8x8xf32> to vector<8xf32>
    %55 = vector.shape_cast %54 : vector<8xf32> to vector<8x1xf32>
    %56 = tpu.reciprocal %55 {approx = true} : vector<8x1xf32> -> vector<8x1xf32>
    %57 = vector.broadcast %56 : vector<8x1xf32> to vector<8x8xf32>
    %58 = arith.mulf %53, %57 : vector<8x8xf32>
    %cst_23 = arith.constant dense<0.000000e+00> : vector<8x8xf32>
    %59 = tpu.matmul %58, %44, %cst_23 {dimension_numbers = #tpu.dot_dimension_numbers<[1], [0], [0], [1], [0, 0, 1, 1], [], []>} : vector<8x8xf32>, vector<8x8xf32>, vector<8x8xf32> -> vector<8x8xf32>
    %60 = tpu.concatenate %41, %59 in 1 : vector<8x8xf32>, vector<8x8xf32> -> vector<8x16xf32>
    %61 = vector.extract_strided_slice %21 {offsets = [8, 0], sizes = [8, 8], strides = [1, 1]} : vector<16x16xf32> to vector<8x8xf32>
    %62 = vector.extract_strided_slice %22 {offsets = [8, 0], sizes = [8, 8], strides = [1, 1]} : vector<16x16xf32> to vector<8x8xf32>
    %63 = vector.extract_strided_slice %23 {offsets = [8, 0], sizes = [8, 8], strides = [1, 1]} : vector<16x16xf32> to vector<8x8xf32>
    %cst_24 = arith.constant dense<0.000000e+00> : vector<8x8xf32>
    %64 = tpu.matmul %61, %62, %cst_24 {dimension_numbers = #tpu.dot_dimension_numbers<[1], [1], [0], [0], [0, 0, 1, 0], [], []>} : vector<8x8xf32>, vector<8x8xf32>, vector<8x8xf32> -> vector<8x8xf32>
    %cst_25 = arith.constant 0.353553385 : f32
    %65 = vector.broadcast %cst_25 : f32 to vector<8x8xf32>
    %66 = arith.mulf %64, %65 : vector<8x8xf32>
    %67 = arith.addf %66, %5 : vector<8x8xf32>
    %cst_26 = arith.constant dense<0xFF800000> : vector<8xf32>
    %68 = vector.multi_reduction <maximumf>, %67, %cst_26 [1] : vector<8x8xf32> to vector<8xf32>
    %69 = vector.shape_cast %68 : vector<8xf32> to vector<8x1xf32>
    %70 = vector.broadcast %69 : vector<8x1xf32> to vector<8x8xf32>
    %71 = arith.subf %67, %70 : vector<8x8xf32>
    %72 = math.exp %71 : vector<8x8xf32>
    %cst_27 = arith.constant dense<0.000000e+00> : vector<8xf32>
    %73 = vector.multi_reduction <add>, %72, %cst_27 [1] : vector<8x8xf32> to vector<8xf32>
    %74 = vector.shape_cast %73 : vector<8xf32> to vector<8x1xf32>
    %75 = tpu.reciprocal %74 {approx = true} : vector<8x1xf32> -> vector<8x1xf32>
    %76 = vector.broadcast %75 : vector<8x1xf32> to vector<8x8xf32>
    %77 = arith.mulf %72, %76 : vector<8x8xf32>
    %cst_28 = arith.constant dense<0.000000e+00> : vector<8x8xf32>
    %78 = tpu.matmul %77, %63, %cst_28 {dimension_numbers = #tpu.dot_dimension_numbers<[1], [0], [0], [1], [0, 0, 1, 1], [], []>} : vector<8x8xf32>, vector<8x8xf32>, vector<8x8xf32> -> vector<8x8xf32>
    %79 = vector.extract_strided_slice %21 {offsets = [8, 8], sizes = [8, 8], strides = [1, 1]} : vector<16x16xf32> to vector<8x8xf32>
    %80 = vector.extract_strided_slice %22 {offsets = [8, 8], sizes = [8, 8], strides = [1, 1]} : vector<16x16xf32> to vector<8x8xf32>
    %81 = vector.extract_strided_slice %23 {offsets = [8, 8], sizes = [8, 8], strides = [1, 1]} : vector<16x16xf32> to vector<8x8xf32>
    %cst_29 = arith.constant dense<0.000000e+00> : vector<8x8xf32>
    %82 = tpu.matmul %79, %80, %cst_29 {dimension_numbers = #tpu.dot_dimension_numbers<[1], [1], [0], [0], [0, 0, 1, 0], [], []>} : vector<8x8xf32>, vector<8x8xf32>, vector<8x8xf32> -> vector<8x8xf32>
    %cst_30 = arith.constant 0.353553385 : f32
    %83 = vector.broadcast %cst_30 : f32 to vector<8x8xf32>
    %84 = arith.mulf %82, %83 : vector<8x8xf32>
    %85 = arith.addf %84, %5 : vector<8x8xf32>
    %cst_31 = arith.constant dense<0xFF800000> : vector<8xf32>
    %86 = vector.multi_reduction <maximumf>, %85, %cst_31 [1] : vector<8x8xf32> to vector<8xf32>
    %87 = vector.shape_cast %86 : vector<8xf32> to vector<8x1xf32>
    %88 = vector.broadcast %87 : vector<8x1xf32> to vector<8x8xf32>
    %89 = arith.subf %85, %88 : vector<8x8xf32>
    %90 = math.exp %89 : vector<8x8xf32>
    %cst_32 = arith.constant dense<0.000000e+00> : vector<8xf32>
    %91 = vector.multi_reduction <add>, %90, %cst_32 [1] : vector<8x8xf32> to vector<8xf32>
    %92 = vector.shape_cast %91 : vector<8xf32> to vector<8x1xf32>
    %93 = tpu.reciprocal %92 {approx = true} : vector<8x1xf32> -> vector<8x1xf32>
    %94 = vector.broadcast %93 : vector<8x1xf32> to vector<8x8xf32>
    %95 = arith.mulf %90, %94 : vector<8x8xf32>
    %cst_33 = arith.constant dense<0.000000e+00> : vector<8x8xf32>
    %96 = tpu.matmul %95, %81, %cst_33 {dimension_numbers = #tpu.dot_dimension_numbers<[1], [0], [0], [1], [0, 0, 1, 1], [], []>} : vector<8x8xf32>, vector<8x8xf32>, vector<8x8xf32> -> vector<8x8xf32>
    %97 = tpu.concatenate %78, %96 in 1 : vector<8x8xf32>, vector<8x8xf32> -> vector<8x16xf32>
    %98 = tpu.concatenate %60, %97 in 0 : vector<8x16xf32>, vector<8x16xf32> -> vector<16x16xf32>
    %c0_34 = arith.constant 0 : index
    %c0_35 = arith.constant 0 : index
    %99 = vector.load %arg6[%c0_34, %c0_35] : memref<16x16xf32, #tpu.memory_space<vmem>>, vector<16x16xf32>
    %cst_36 = arith.constant dense<0.000000e+00> : vector<16x16xf32>
    %100 = tpu.matmul %98, %99, %cst_36 {dimension_numbers = #tpu.dot_dimension_numbers<[1], [0], [0], [1], [0, 0, 1, 1], [], []>} : vector<16x16xf32>, vector<16x16xf32>, vector<16x16xf32> -> vector<16x16xf32>
    %c0_37 = arith.constant 0 : index
    %c0_38 = arith.constant 0 : index
    %101 = vector.load %arg7[%c0_37, %c0_38] : memref<1x16xf32, #tpu.memory_space<vmem>>, vector<1x16xf32>
    %102 = vector.broadcast %101 : vector<1x16xf32> to vector<16x16xf32>
    %103 = arith.addf %100, %102 : vector<16x16xf32>
    %cst_39 = arith.constant 0.000000e+00 : f32
    %104 = vector.broadcast %cst_39 : f32 to vector<16x16xf32>
    %105 = arith.maximumf %103, %104 : vector<16x16xf32>
    %106 = arith.addf %13, %105 : vector<16x16xf32>
    %cst_40 = arith.constant dense<0.000000e+00> : vector<16xf32>
    %107 = vector.multi_reduction <add>, %106, %cst_40 [1] : vector<16x16xf32> to vector<16xf32>
    %108 = vector.shape_cast %107 : vector<16xf32> to vector<16x1xf32>
    %cst_41 = arith.constant 1.600000e+01 : f32
    %109 = vector.broadcast %cst_41 : f32 to vector<16x1xf32>
    %110 = arith.divf %108, %109 : vector<16x1xf32>
    %111 = vector.broadcast %110 : vector<16x1xf32> to vector<16x16xf32>
    %112 = arith.subf %106, %111 : vector<16x16xf32>
    %113 = arith.mulf %112, %112 : vector<16x16xf32>
    %cst_42 = arith.constant dense<0.000000e+00> : vector<16xf32>
    %114 = vector.multi_reduction <add>, %113, %cst_42 [1] : vector<16x16xf32> to vector<16xf32>
    %115 = vector.shape_cast %114 : vector<16xf32> to vector<16x1xf32>
    %cst_43 = arith.constant 1.600000e+01 : f32
    %116 = vector.broadcast %cst_43 : f32 to vector<16x1xf32>
    %117 = arith.divf %115, %116 : vector<16x1xf32>
    %118 = vector.broadcast %110 : vector<16x1xf32> to vector<16x16xf32>
    %119 = arith.subf %106, %118 : vector<16x16xf32>
    %cst_44 = arith.constant 9.99999974E-6 : f32
    %120 = vector.broadcast %cst_44 : f32 to vector<16x1xf32>
    %121 = arith.addf %117, %120 : vector<16x1xf32>
    %122 = math.rsqrt %121 : vector<16x1xf32>
    %123 = vector.broadcast %122 : vector<16x1xf32> to vector<16x16xf32>
    %124 = arith.mulf %119, %123 : vector<16x16xf32>
    %c0_45 = arith.constant 0 : index
    %c0_46 = arith.constant 0 : index
    %125 = vector.load %arg12[%c0_45, %c0_46] : memref<1x16xf32, #tpu.memory_space<vmem>>, vector<1x16xf32>
    %126 = vector.broadcast %125 : vector<1x16xf32> to vector<16x16xf32>
    %127 = arith.mulf %124, %126 : vector<16x16xf32>
    %c0_47 = arith.constant 0 : index
    %c0_48 = arith.constant 0 : index
    %128 = vector.load %arg13[%c0_47, %c0_48] : memref<1x16xf32, #tpu.memory_space<vmem>>, vector<1x16xf32>
    %129 = vector.broadcast %128 : vector<1x16xf32> to vector<16x16xf32>
    %130 = arith.addf %127, %129 : vector<16x16xf32>
    %c0_49 = arith.constant 0 : index
    %c0_50 = arith.constant 0 : index
    %131 = vector.load %arg8[%c0_49, %c0_50] : memref<16x32xf32, #tpu.memory_space<vmem>>, vector<16x32xf32>
    %cst_51 = arith.constant dense<0.000000e+00> : vector<16x32xf32>
    %132 = tpu.matmul %130, %131, %cst_51 {dimension_numbers = #tpu.dot_dimension_numbers<[1], [0], [0], [1], [0, 0, 1, 1], [], []>} : vector<16x16xf32>, vector<16x32xf32>, vector<16x32xf32> -> vector<16x32xf32>
    %c0_52 = arith.constant 0 : index
    %c0_53 = arith.constant 0 : index
    %133 = vector.load %arg9[%c0_52, %c0_53] : memref<1x32xf32, #tpu.memory_space<vmem>>, vector<1x32xf32>
    %134 = vector.broadcast %133 : vector<1x32xf32> to vector<16x32xf32>
    %135 = arith.addf %132, %134 : vector<16x32xf32>
    %cst_54 = arith.constant 0.000000e+00 : f32
    %136 = vector.broadcast %cst_54 : f32 to vector<16x32xf32>
    %137 = arith.maximumf %135, %136 : vector<16x32xf32>
    %c0_55 = arith.constant 0 : index
    %c0_56 = arith.constant 0 : index
    %138 = vector.load %arg10[%c0_55, %c0_56] : memref<32x16xf32, #tpu.memory_space<vmem>>, vector<32x16xf32>
    %cst_57 = arith.constant dense<0.000000e+00> : vector<16x16xf32>
    %139 = tpu.matmul %137, %138, %cst_57 {dimension_numbers = #tpu.dot_dimension_numbers<[1], [0], [0], [1], [0, 0, 1, 1], [], []>} : vector<16x32xf32>, vector<32x16xf32>, vector<16x16xf32> -> vector<16x16xf32>
    %c0_58 = arith.constant 0 : index
    %c0_59 = arith.constant 0 : index
    %140 = vector.load %arg11[%c0_58, %c0_59] : memref<1x16xf32, #tpu.memory_space<vmem>>, vector<1x16xf32>
    %141 = vector.broadcast %140 : vector<1x16xf32> to vector<16x16xf32>
    %142 = arith.addf %139, %141 : vector<16x16xf32>
    %143 = arith.addf %130, %142 : vector<16x16xf32>
    %cst_60 = arith.constant dense<0.000000e+00> : vector<16xf32>
    %144 = vector.multi_reduction <add>, %143, %cst_60 [1] : vector<16x16xf32> to vector<16xf32>
    %145 = vector.shape_cast %144 : vector<16xf32> to vector<16x1xf32>
    %cst_61 = arith.constant 1.600000e+01 : f32
    %146 = vector.broadcast %cst_61 : f32 to vector<16x1xf32>
    %147 = arith.divf %145, %146 : vector<16x1xf32>
    %148 = vector.broadcast %147 : vector<16x1xf32> to vector<16x16xf32>
    %149 = arith.subf %143, %148 : vector<16x16xf32>
    %150 = arith.mulf %149, %149 : vector<16x16xf32>
    %cst_62 = arith.constant dense<0.000000e+00> : vector<16xf32>
    %151 = vector.multi_reduction <add>, %150, %cst_62 [1] : vector<16x16xf32> to vector<16xf32>
    %152 = vector.shape_cast %151 : vector<16xf32> to vector<16x1xf32>
    %cst_63 = arith.constant 1.600000e+01 : f32
    %153 = vector.broadcast %cst_63 : f32 to vector<16x1xf32>
    %154 = arith.divf %152, %153 : vector<16x1xf32>
    %155 = vector.broadcast %147 : vector<16x1xf32> to vector<16x16xf32>
    %156 = arith.subf %143, %155 : vector<16x16xf32>
    %cst_64 = arith.constant 9.99999974E-6 : f32
    %157 = vector.broadcast %cst_64 : f32 to vector<16x1xf32>
    %158 = arith.addf %154, %157 : vector<16x1xf32>
    %159 = math.rsqrt %158 : vector<16x1xf32>
    %160 = vector.broadcast %159 : vector<16x1xf32> to vector<16x16xf32>
    %161 = arith.mulf %156, %160 : vector<16x16xf32>
    %c0_65 = arith.constant 0 : index
    %c0_66 = arith.constant 0 : index
    %162 = vector.load %arg14[%c0_65, %c0_66] : memref<1x16xf32, #tpu.memory_space<vmem>>, vector<1x16xf32>
    %163 = vector.broadcast %162 : vector<1x16xf32> to vector<16x16xf32>
    %164 = arith.mulf %161, %163 : vector<16x16xf32>
    %c0_67 = arith.constant 0 : index
    %c0_68 = arith.constant 0 : index
    %165 = vector.load %arg15[%c0_67, %c0_68] : memref<1x16xf32, #tpu.memory_space<vmem>>, vector<1x16xf32>
    %166 = vector.broadcast %165 : vector<1x16xf32> to vector<16x16xf32>
    %167 = arith.addf %164, %166 : vector<16x16xf32>
    %c0_69 = arith.constant 0 : index
    %c0_70 = arith.constant 0 : index
    %168 = vector.load %arg16[%c0_69, %c0_70] : memref<16x48xf32, #tpu.memory_space<vmem>>, vector<16x48xf32>
    %cst_71 = arith.constant dense<0.000000e+00> : vector<16x48xf32>
    %169 = tpu.matmul %167, %168, %cst_71 {dimension_numbers = #tpu.dot_dimension_numbers<[1], [0], [0], [1], [0, 0, 1, 1], [], []>} : vector<16x16xf32>, vector<16x48xf32>, vector<16x48xf32> -> vector<16x48xf32>
    %c0_72 = arith.constant 0 : index
    %c0_73 = arith.constant 0 : index
    %170 = vector.load %arg17[%c0_72, %c0_73] : memref<1x48xf32, #tpu.memory_space<vmem>>, vector<1x48xf32>
    %171 = vector.broadcast %170 : vector<1x48xf32> to vector<16x48xf32>
    %172 = arith.addf %169, %171 : vector<16x48xf32>
    %cst_74 = arith.constant 0.000000e+00 : f32
    %173 = vector.broadcast %cst_74 : f32 to vector<16x48xf32>
    %174 = arith.maximumf %172, %173 : vector<16x48xf32>
    %175 = vector.extract_strided_slice %174 {offsets = [0, 0], sizes = [16, 16], strides = [1, 1]} : vector<16x48xf32> to vector<16x16xf32>
    %176 = vector.extract_strided_slice %174 {offsets = [0, 16], sizes = [16, 16], strides = [1, 1]} : vector<16x48xf32> to vector<16x16xf32>
    %177 = vector.extract_strided_slice %174 {offsets = [0, 32], sizes = [16, 16], strides = [1, 1]} : vector<16x48xf32> to vector<16x16xf32>
    %178 = vector.extract_strided_slice %175 {offsets = [0, 0], sizes = [8, 8], strides = [1, 1]} : vector<16x16xf32> to vector<8x8xf32>
    %179 = vector.extract_strided_slice %176 {offsets = [0, 0], sizes = [8, 8], strides = [1, 1]} : vector<16x16xf32> to vector<8x8xf32>
    %180 = vector.extract_strided_slice %177 {offsets = [0, 0], sizes = [8, 8], strides = [1, 1]} : vector<16x16xf32> to vector<8x8xf32>
    %cst_75 = arith.constant dense<0.000000e+00> : vector<8x8xf32>
    %181 = tpu.matmul %178, %179, %cst_75 {dimension_numbers = #tpu.dot_dimension_numbers<[1], [1], [0], [0], [0, 0, 1, 0], [], []>} : vector<8x8xf32>, vector<8x8xf32>, vector<8x8xf32> -> vector<8x8xf32>
    %cst_76 = arith.constant 0.353553385 : f32
    %182 = vector.broadcast %cst_76 : f32 to vector<8x8xf32>
    %183 = arith.mulf %181, %182 : vector<8x8xf32>
    %184 = arith.addf %183, %5 : vector<8x8xf32>
    %cst_77 = arith.constant dense<0xFF800000> : vector<8xf32>
    %185 = vector.multi_reduction <maximumf>, %184, %cst_77 [1] : vector<8x8xf32> to vector<8xf32>
    %186 = vector.shape_cast %185 : vector<8xf32> to vector<8x1xf32>
    %187 = vector.broadcast %186 : vector<8x1xf32> to vector<8x8xf32>
    %188 = arith.subf %184, %187 : vector<8x8xf32>
    %189 = math.exp %188 : vector<8x8xf32>
    %cst_78 = arith.constant dense<0.000000e+00> : vector<8xf32>
    %190 = vector.multi_reduction <add>, %189, %cst_78 [1] : vector<8x8xf32> to vector<8xf32>
    %191 = vector.shape_cast %190 : vector<8xf32> to vector<8x1xf32>
    %192 = tpu.reciprocal %191 {approx = true} : vector<8x1xf32> -> vector<8x1xf32>
    %193 = vector.broadcast %192 : vector<8x1xf32> to vector<8x8xf32>
    %194 = arith.mulf %189, %193 : vector<8x8xf32>
    %cst_79 = arith.constant dense<0.000000e+00> : vector<8x8xf32>
    %195 = tpu.matmul %194, %180, %cst_79 {dimension_numbers = #tpu.dot_dimension_numbers<[1], [0], [0], [1], [0, 0, 1, 1], [], []>} : vector<8x8xf32>, vector<8x8xf32>, vector<8x8xf32> -> vector<8x8xf32>
    %196 = vector.extract_strided_slice %175 {offsets = [0, 8], sizes = [8, 8], strides = [1, 1]} : vector<16x16xf32> to vector<8x8xf32>
    %197 = vector.extract_strided_slice %176 {offsets = [0, 8], sizes = [8, 8], strides = [1, 1]} : vector<16x16xf32> to vector<8x8xf32>
    %198 = vector.extract_strided_slice %177 {offsets = [0, 8], sizes = [8, 8], strides = [1, 1]} : vector<16x16xf32> to vector<8x8xf32>
    %cst_80 = arith.constant dense<0.000000e+00> : vector<8x8xf32>
    %199 = tpu.matmul %196, %197, %cst_80 {dimension_numbers = #tpu.dot_dimension_numbers<[1], [1], [0], [0], [0, 0, 1, 0], [], []>} : vector<8x8xf32>, vector<8x8xf32>, vector<8x8xf32> -> vector<8x8xf32>
    %cst_81 = arith.constant 0.353553385 : f32
    %200 = vector.broadcast %cst_81 : f32 to vector<8x8xf32>
    %201 = arith.mulf %199, %200 : vector<8x8xf32>
    %202 = arith.addf %201, %5 : vector<8x8xf32>
    %cst_82 = arith.constant dense<0xFF800000> : vector<8xf32>
    %203 = vector.multi_reduction <maximumf>, %202, %cst_82 [1] : vector<8x8xf32> to vector<8xf32>
    %204 = vector.shape_cast %203 : vector<8xf32> to vector<8x1xf32>
    %205 = vector.broadcast %204 : vector<8x1xf32> to vector<8x8xf32>
    %206 = arith.subf %202, %205 : vector<8x8xf32>
    %207 = math.exp %206 : vector<8x8xf32>
    %cst_83 = arith.constant dense<0.000000e+00> : vector<8xf32>
    %208 = vector.multi_reduction <add>, %207, %cst_83 [1] : vector<8x8xf32> to vector<8xf32>
    %209 = vector.shape_cast %208 : vector<8xf32> to vector<8x1xf32>
    %210 = tpu.reciprocal %209 {approx = true} : vector<8x1xf32> -> vector<8x1xf32>
    %211 = vector.broadcast %210 : vector<8x1xf32> to vector<8x8xf32>
    %212 = arith.mulf %207, %211 : vector<8x8xf32>
    %cst_84 = arith.constant dense<0.000000e+00> : vector<8x8xf32>
    %213 = tpu.matmul %212, %198, %cst_84 {dimension_numbers = #tpu.dot_dimension_numbers<[1], [0], [0], [1], [0, 0, 1, 1], [], []>} : vector<8x8xf32>, vector<8x8xf32>, vector<8x8xf32> -> vector<8x8xf32>
    %214 = tpu.concatenate %195, %213 in 1 : vector<8x8xf32>, vector<8x8xf32> -> vector<8x16xf32>
    %215 = vector.extract_strided_slice %175 {offsets = [8, 0], sizes = [8, 8], strides = [1, 1]} : vector<16x16xf32> to vector<8x8xf32>
    %216 = vector.extract_strided_slice %176 {offsets = [8, 0], sizes = [8, 8], strides = [1, 1]} : vector<16x16xf32> to vector<8x8xf32>
    %217 = vector.extract_strided_slice %177 {offsets = [8, 0], sizes = [8, 8], strides = [1, 1]} : vector<16x16xf32> to vector<8x8xf32>
    %cst_85 = arith.constant dense<0.000000e+00> : vector<8x8xf32>
    %218 = tpu.matmul %215, %216, %cst_85 {dimension_numbers = #tpu.dot_dimension_numbers<[1], [1], [0], [0], [0, 0, 1, 0], [], []>} : vector<8x8xf32>, vector<8x8xf32>, vector<8x8xf32> -> vector<8x8xf32>
    %cst_86 = arith.constant 0.353553385 : f32
    %219 = vector.broadcast %cst_86 : f32 to vector<8x8xf32>
    %220 = arith.mulf %218, %219 : vector<8x8xf32>
    %221 = arith.addf %220, %5 : vector<8x8xf32>
    %cst_87 = arith.constant dense<0xFF800000> : vector<8xf32>
    %222 = vector.multi_reduction <maximumf>, %221, %cst_87 [1] : vector<8x8xf32> to vector<8xf32>
    %223 = vector.shape_cast %222 : vector<8xf32> to vector<8x1xf32>
    %224 = vector.broadcast %223 : vector<8x1xf32> to vector<8x8xf32>
    %225 = arith.subf %221, %224 : vector<8x8xf32>
    %226 = math.exp %225 : vector<8x8xf32>
    %cst_88 = arith.constant dense<0.000000e+00> : vector<8xf32>
    %227 = vector.multi_reduction <add>, %226, %cst_88 [1] : vector<8x8xf32> to vector<8xf32>
    %228 = vector.shape_cast %227 : vector<8xf32> to vector<8x1xf32>
    %229 = tpu.reciprocal %228 {approx = true} : vector<8x1xf32> -> vector<8x1xf32>
    %230 = vector.broadcast %229 : vector<8x1xf32> to vector<8x8xf32>
    %231 = arith.mulf %226, %230 : vector<8x8xf32>
    %cst_89 = arith.constant dense<0.000000e+00> : vector<8x8xf32>
    %232 = tpu.matmul %231, %217, %cst_89 {dimension_numbers = #tpu.dot_dimension_numbers<[1], [0], [0], [1], [0, 0, 1, 1], [], []>} : vector<8x8xf32>, vector<8x8xf32>, vector<8x8xf32> -> vector<8x8xf32>
    %233 = vector.extract_strided_slice %175 {offsets = [8, 8], sizes = [8, 8], strides = [1, 1]} : vector<16x16xf32> to vector<8x8xf32>
    %234 = vector.extract_strided_slice %176 {offsets = [8, 8], sizes = [8, 8], strides = [1, 1]} : vector<16x16xf32> to vector<8x8xf32>
    %235 = vector.extract_strided_slice %177 {offsets = [8, 8], sizes = [8, 8], strides = [1, 1]} : vector<16x16xf32> to vector<8x8xf32>
    %cst_90 = arith.constant dense<0.000000e+00> : vector<8x8xf32>
    %236 = tpu.matmul %233, %234, %cst_90 {dimension_numbers = #tpu.dot_dimension_numbers<[1], [1], [0], [0], [0, 0, 1, 0], [], []>} : vector<8x8xf32>, vector<8x8xf32>, vector<8x8xf32> -> vector<8x8xf32>
    %cst_91 = arith.constant 0.353553385 : f32
    %237 = vector.broadcast %cst_91 : f32 to vector<8x8xf32>
    %238 = arith.mulf %236, %237 : vector<8x8xf32>
    %239 = arith.addf %238, %5 : vector<8x8xf32>
    %cst_92 = arith.constant dense<0xFF800000> : vector<8xf32>
    %240 = vector.multi_reduction <maximumf>, %239, %cst_92 [1] : vector<8x8xf32> to vector<8xf32>
    %241 = vector.shape_cast %240 : vector<8xf32> to vector<8x1xf32>
    %242 = vector.broadcast %241 : vector<8x1xf32> to vector<8x8xf32>
    %243 = arith.subf %239, %242 : vector<8x8xf32>
    %244 = math.exp %243 : vector<8x8xf32>
    %cst_93 = arith.constant dense<0.000000e+00> : vector<8xf32>
    %245 = vector.multi_reduction <add>, %244, %cst_93 [1] : vector<8x8xf32> to vector<8xf32>
    %246 = vector.shape_cast %245 : vector<8xf32> to vector<8x1xf32>
    %247 = tpu.reciprocal %246 {approx = true} : vector<8x1xf32> -> vector<8x1xf32>
    %248 = vector.broadcast %247 : vector<8x1xf32> to vector<8x8xf32>
    %249 = arith.mulf %244, %248 : vector<8x8xf32>
    %cst_94 = arith.constant dense<0.000000e+00> : vector<8x8xf32>
    %250 = tpu.matmul %249, %235, %cst_94 {dimension_numbers = #tpu.dot_dimension_numbers<[1], [0], [0], [1], [0, 0, 1, 1], [], []>} : vector<8x8xf32>, vector<8x8xf32>, vector<8x8xf32> -> vector<8x8xf32>
    %251 = tpu.concatenate %232, %250 in 1 : vector<8x8xf32>, vector<8x8xf32> -> vector<8x16xf32>
    %252 = tpu.concatenate %214, %251 in 0 : vector<8x16xf32>, vector<8x16xf32> -> vector<16x16xf32>
    %c0_95 = arith.constant 0 : index
    %c0_96 = arith.constant 0 : index
    %253 = vector.load %arg18[%c0_95, %c0_96] : memref<16x16xf32, #tpu.memory_space<vmem>>, vector<16x16xf32>
    %cst_97 = arith.constant dense<0.000000e+00> : vector<16x16xf32>
    %254 = tpu.matmul %252, %253, %cst_97 {dimension_numbers = #tpu.dot_dimension_numbers<[1], [0], [0], [1], [0, 0, 1, 1], [], []>} : vector<16x16xf32>, vector<16x16xf32>, vector<16x16xf32> -> vector<16x16xf32>
    %c0_98 = arith.constant 0 : index
    %c0_99 = arith.constant 0 : index
    %255 = vector.load %arg19[%c0_98, %c0_99] : memref<1x16xf32, #tpu.memory_space<vmem>>, vector<1x16xf32>
    %256 = vector.broadcast %255 : vector<1x16xf32> to vector<16x16xf32>
    %257 = arith.addf %254, %256 : vector<16x16xf32>
    %cst_100 = arith.constant 0.000000e+00 : f32
    %258 = vector.broadcast %cst_100 : f32 to vector<16x16xf32>
    %259 = arith.maximumf %257, %258 : vector<16x16xf32>
    %260 = arith.addf %167, %259 : vector<16x16xf32>
    %cst_101 = arith.constant dense<0.000000e+00> : vector<16xf32>
    %261 = vector.multi_reduction <add>, %260, %cst_101 [1] : vector<16x16xf32> to vector<16xf32>
    %262 = vector.shape_cast %261 : vector<16xf32> to vector<16x1xf32>
    %cst_102 = arith.constant 1.600000e+01 : f32
    %263 = vector.broadcast %cst_102 : f32 to vector<16x1xf32>
    %264 = arith.divf %262, %263 : vector<16x1xf32>
    %265 = vector.broadcast %264 : vector<16x1xf32> to vector<16x16xf32>
    %266 = arith.subf %260, %265 : vector<16x16xf32>
    %267 = arith.mulf %266, %266 : vector<16x16xf32>
    %cst_103 = arith.constant dense<0.000000e+00> : vector<16xf32>
    %268 = vector.multi_reduction <add>, %267, %cst_103 [1] : vector<16x16xf32> to vector<16xf32>
    %269 = vector.shape_cast %268 : vector<16xf32> to vector<16x1xf32>
    %cst_104 = arith.constant 1.600000e+01 : f32
    %270 = vector.broadcast %cst_104 : f32 to vector<16x1xf32>
    %271 = arith.divf %269, %270 : vector<16x1xf32>
    %272 = vector.broadcast %264 : vector<16x1xf32> to vector<16x16xf32>
    %273 = arith.subf %260, %272 : vector<16x16xf32>
    %cst_105 = arith.constant 9.99999974E-6 : f32
    %274 = vector.broadcast %cst_105 : f32 to vector<16x1xf32>
    %275 = arith.addf %271, %274 : vector<16x1xf32>
    %276 = math.rsqrt %275 : vector<16x1xf32>
    %277 = vector.broadcast %276 : vector<16x1xf32> to vector<16x16xf32>
    %278 = arith.mulf %273, %277 : vector<16x16xf32>
    %c0_106 = arith.constant 0 : index
    %c0_107 = arith.constant 0 : index
    %279 = vector.load %arg24[%c0_106, %c0_107] : memref<1x16xf32, #tpu.memory_space<vmem>>, vector<1x16xf32>
    %280 = vector.broadcast %279 : vector<1x16xf32> to vector<16x16xf32>
    %281 = arith.mulf %278, %280 : vector<16x16xf32>
    %c0_108 = arith.constant 0 : index
    %c0_109 = arith.constant 0 : index
    %282 = vector.load %arg25[%c0_108, %c0_109] : memref<1x16xf32, #tpu.memory_space<vmem>>, vector<1x16xf32>
    %283 = vector.broadcast %282 : vector<1x16xf32> to vector<16x16xf32>
    %284 = arith.addf %281, %283 : vector<16x16xf32>
    %c0_110 = arith.constant 0 : index
    %c0_111 = arith.constant 0 : index
    %285 = vector.load %arg20[%c0_110, %c0_111] : memref<16x32xf32, #tpu.memory_space<vmem>>, vector<16x32xf32>
    %cst_112 = arith.constant dense<0.000000e+00> : vector<16x32xf32>
    %286 = tpu.matmul %284, %285, %cst_112 {dimension_numbers = #tpu.dot_dimension_numbers<[1], [0], [0], [1], [0, 0, 1, 1], [], []>} : vector<16x16xf32>, vector<16x32xf32>, vector<16x32xf32> -> vector<16x32xf32>
    %c0_113 = arith.constant 0 : index
    %c0_114 = arith.constant 0 : index
    %287 = vector.load %arg21[%c0_113, %c0_114] : memref<1x32xf32, #tpu.memory_space<vmem>>, vector<1x32xf32>
    %288 = vector.broadcast %287 : vector<1x32xf32> to vector<16x32xf32>
    %289 = arith.addf %286, %288 : vector<16x32xf32>
    %cst_115 = arith.constant 0.000000e+00 : f32
    %290 = vector.broadcast %cst_115 : f32 to vector<16x32xf32>
    %291 = arith.maximumf %289, %290 : vector<16x32xf32>
    %c0_116 = arith.constant 0 : index
    %c0_117 = arith.constant 0 : index
    %292 = vector.load %arg22[%c0_116, %c0_117] : memref<32x16xf32, #tpu.memory_space<vmem>>, vector<32x16xf32>
    %cst_118 = arith.constant dense<0.000000e+00> : vector<16x16xf32>
    %293 = tpu.matmul %291, %292, %cst_118 {dimension_numbers = #tpu.dot_dimension_numbers<[1], [0], [0], [1], [0, 0, 1, 1], [], []>} : vector<16x32xf32>, vector<32x16xf32>, vector<16x16xf32> -> vector<16x16xf32>
    %c0_119 = arith.constant 0 : index
    %c0_120 = arith.constant 0 : index
    %294 = vector.load %arg23[%c0_119, %c0_120] : memref<1x16xf32, #tpu.memory_space<vmem>>, vector<1x16xf32>
    %295 = vector.broadcast %294 : vector<1x16xf32> to vector<16x16xf32>
    %296 = arith.addf %293, %295 : vector<16x16xf32>
    %297 = arith.addf %284, %296 : vector<16x16xf32>
    %cst_121 = arith.constant dense<0.000000e+00> : vector<16xf32>
    %298 = vector.multi_reduction <add>, %297, %cst_121 [1] : vector<16x16xf32> to vector<16xf32>
    %299 = vector.shape_cast %298 : vector<16xf32> to vector<16x1xf32>
    %cst_122 = arith.constant 1.600000e+01 : f32
    %300 = vector.broadcast %cst_122 : f32 to vector<16x1xf32>
    %301 = arith.divf %299, %300 : vector<16x1xf32>
    %302 = vector.broadcast %301 : vector<16x1xf32> to vector<16x16xf32>
    %303 = arith.subf %297, %302 : vector<16x16xf32>
    %304 = arith.mulf %303, %303 : vector<16x16xf32>
    %cst_123 = arith.constant dense<0.000000e+00> : vector<16xf32>
    %305 = vector.multi_reduction <add>, %304, %cst_123 [1] : vector<16x16xf32> to vector<16xf32>
    %306 = vector.shape_cast %305 : vector<16xf32> to vector<16x1xf32>
    %cst_124 = arith.constant 1.600000e+01 : f32
    %307 = vector.broadcast %cst_124 : f32 to vector<16x1xf32>
    %308 = arith.divf %306, %307 : vector<16x1xf32>
    %309 = vector.broadcast %301 : vector<16x1xf32> to vector<16x16xf32>
    %310 = arith.subf %297, %309 : vector<16x16xf32>
    %cst_125 = arith.constant 9.99999974E-6 : f32
    %311 = vector.broadcast %cst_125 : f32 to vector<16x1xf32>
    %312 = arith.addf %308, %311 : vector<16x1xf32>
    %313 = math.rsqrt %312 : vector<16x1xf32>
    %314 = vector.broadcast %313 : vector<16x1xf32> to vector<16x16xf32>
    %315 = arith.mulf %310, %314 : vector<16x16xf32>
    %c0_126 = arith.constant 0 : index
    %c0_127 = arith.constant 0 : index
    %316 = vector.load %arg26[%c0_126, %c0_127] : memref<1x16xf32, #tpu.memory_space<vmem>>, vector<1x16xf32>
    %317 = vector.broadcast %316 : vector<1x16xf32> to vector<16x16xf32>
    %318 = arith.mulf %315, %317 : vector<16x16xf32>
    %c0_128 = arith.constant 0 : index
    %c0_129 = arith.constant 0 : index
    %319 = vector.load %arg27[%c0_128, %c0_129] : memref<1x16xf32, #tpu.memory_space<vmem>>, vector<1x16xf32>
    %320 = vector.broadcast %319 : vector<1x16xf32> to vector<16x16xf32>
    %321 = arith.addf %318, %320 : vector<16x16xf32>
    %322 = vector.extract_strided_slice %321 {offsets = [0, 0], sizes = [8, 16], strides = [1, 1]} : vector<16x16xf32> to vector<8x16xf32>
    %cst_130 = arith.constant dense<0.000000e+00> : vector<16xf32>
    %323 = vector.multi_reduction <add>, %322, %cst_130 [0] : vector<8x16xf32> to vector<16xf32>
    %324 = vector.shape_cast %323 : vector<16xf32> to vector<1x16xf32>
    %cst_131 = arith.constant 8.000000e+00 : f32
    %325 = vector.broadcast %cst_131 : f32 to vector<1x16xf32>
    %326 = arith.divf %324, %325 : vector<1x16xf32>
    %327 = vector.extract_strided_slice %321 {offsets = [8, 0], sizes = [8, 16], strides = [1, 1]} : vector<16x16xf32> to vector<8x16xf32>
    %cst_132 = arith.constant dense<0.000000e+00> : vector<16xf32>
    %328 = vector.multi_reduction <add>, %327, %cst_132 [0] : vector<8x16xf32> to vector<16xf32>
    %329 = vector.shape_cast %328 : vector<16xf32> to vector<1x16xf32>
    %cst_133 = arith.constant 8.000000e+00 : f32
    %330 = vector.broadcast %cst_133 : f32 to vector<1x16xf32>
    %331 = arith.divf %329, %330 : vector<1x16xf32>
    %332 = tpu.concatenate %326, %331 in 0 : vector<1x16xf32>, vector<1x16xf32> -> vector<2x16xf32>
    %c0_134 = arith.constant 0 : index
    %c0_135 = arith.constant 0 : index
    %333 = vector.load %arg1[%c0_134, %c0_135] : memref<2x4xf32, #tpu.memory_space<vmem>>, vector<2x4xf32>
    %334 = tpu.concatenate %332, %333 in 1 : vector<2x16xf32>, vector<2x4xf32> -> vector<2x20xf32>
    %c0_136 = arith.constant 0 : index
    %c0_137 = arith.constant 0 : index
    %335 = vector.load %arg28[%c0_136, %c0_137] : memref<20x32xf32, #tpu.memory_space<vmem>>, vector<20x32xf32>
    %cst_138 = arith.constant dense<0.000000e+00> : vector<2x32xf32>
    %336 = tpu.matmul %334, %335, %cst_138 {dimension_numbers = #tpu.dot_dimension_numbers<[1], [0], [0], [1], [0, 0, 1, 1], [], []>} : vector<2x20xf32>, vector<20x32xf32>, vector<2x32xf32> -> vector<2x32xf32>
    %c0_139 = arith.constant 0 : index
    %c0_140 = arith.constant 0 : index
    %337 = vector.load %arg29[%c0_139, %c0_140] : memref<1x32xf32, #tpu.memory_space<vmem>>, vector<1x32xf32>
    %338 = vector.broadcast %337 : vector<1x32xf32> to vector<2x32xf32>
    %339 = arith.addf %336, %338 : vector<2x32xf32>
    %cst_141 = arith.constant 0.000000e+00 : f32
    %340 = vector.broadcast %cst_141 : f32 to vector<2x32xf32>
    %341 = arith.maximumf %339, %340 : vector<2x32xf32>
    %c0_142 = arith.constant 0 : index
    %c0_143 = arith.constant 0 : index
    %342 = vector.load %arg30[%c0_142, %c0_143] : memref<32x32xf32, #tpu.memory_space<vmem>>, vector<32x32xf32>
    %cst_144 = arith.constant dense<0.000000e+00> : vector<2x32xf32>
    %343 = tpu.matmul %341, %342, %cst_144 {dimension_numbers = #tpu.dot_dimension_numbers<[1], [0], [0], [1], [0, 0, 1, 1], [], []>} : vector<2x32xf32>, vector<32x32xf32>, vector<2x32xf32> -> vector<2x32xf32>
    %c0_145 = arith.constant 0 : index
    %c0_146 = arith.constant 0 : index
    %344 = vector.load %arg31[%c0_145, %c0_146] : memref<1x32xf32, #tpu.memory_space<vmem>>, vector<1x32xf32>
    %345 = vector.broadcast %344 : vector<1x32xf32> to vector<2x32xf32>
    %346 = arith.addf %343, %345 : vector<2x32xf32>
    %cst_147 = arith.constant 0.000000e+00 : f32
    %347 = vector.broadcast %cst_147 : f32 to vector<2x32xf32>
    %348 = arith.maximumf %346, %347 : vector<2x32xf32>
    %c0_148 = arith.constant 0 : index
    %c0_149 = arith.constant 0 : index
    %349 = vector.load %arg32[%c0_148, %c0_149] : memref<32x3xf32, #tpu.memory_space<vmem>>, vector<32x3xf32>
    %cst_150 = arith.constant dense<0.000000e+00> : vector<2x3xf32>
    %350 = tpu.matmul %348, %349, %cst_150 {dimension_numbers = #tpu.dot_dimension_numbers<[1], [0], [0], [1], [0, 0, 1, 1], [], []>} : vector<2x32xf32>, vector<32x3xf32>, vector<2x3xf32> -> vector<2x3xf32>
    %c0_151 = arith.constant 0 : index
    %c0_152 = arith.constant 0 : index
    %351 = vector.load %arg33[%c0_151, %c0_152] : memref<1x3xf32, #tpu.memory_space<vmem>>, vector<1x3xf32>
    %352 = vector.broadcast %351 : vector<1x3xf32> to vector<2x3xf32>
    %353 = arith.addf %350, %352 : vector<2x3xf32>
    %c0_153 = arith.constant 0 : index
    %c0_154 = arith.constant 0 : index
    %354 = vector.load %arg34[%c0_153, %c0_154] : memref<2x3xf32, #tpu.memory_space<vmem>>, vector<2x3xf32>
    tpu.vector_store %arg34[%c0_153, %c0_154], %353 {strides = array<i32>} : memref<2x3xf32, #tpu.memory_space<vmem>>, vector<2x3xf32>,
    return
  }
}

</mosaic_0001>

<llo_original>
// kernel: tpu_custom_call.1
$region0: #{tpu_custom_call.1}
  #allocation0 [shape = 'u32[]', space=smem, size = 0x4, offset = 0x4, fixed_abs, tag = 'smem constant byte address 0x4 - core index']
  #allocation1 [shape = 'u32[72,128]{1,0:T(1,128)}', space=vmem, size = 0x9000, scoped, tag = 'internal scratch']
  %s0 = inlined_call_operand.smem [shape: u32[35], index: -1, kind: input, shape index: {}]
  %s1 = sld [smem:[%s0]]
  %s2 = scalar_lea.smem %s0, 1
  %s3 = sld [smem:[%s2]]
  %s4 = scalar_lea.smem %s0, 2
  %s5 = sld [smem:[%s4]]
  %s6 = scalar_lea.smem %s0, 3
  %s7 = sld [smem:[%s6]]
  %s8 = scalar_lea.smem %s0, 4
  %s9 = sld [smem:[%s8]]
  %s10 = scalar_lea.smem %s0, 5
  %s11 = sld [smem:[%s10]]
  %s12 = scalar_lea.smem %s0, 6
  %s13 = sld [smem:[%s12]]
  %s14 = scalar_lea.smem %s0, 7
  %s15 = sld [smem:[%s14]]
  %s16 = scalar_lea.smem %s0, 8
  %s17 = sld [smem:[%s16]]
  %s18 = scalar_lea.smem %s0, 9
  %s19 = sld [smem:[%s18]]
  %s20 = scalar_lea.smem %s0, 10
  %s21 = sld [smem:[%s20]]
  %s22 = scalar_lea.smem %s0, 11
  %s23 = sld [smem:[%s22]]
  %s24 = scalar_lea.smem %s0, 12
  %s25 = sld [smem:[%s24]]
  %s26 = scalar_lea.smem %s0, 13
  %s27 = sld [smem:[%s26]]
  %s28 = scalar_lea.smem %s0, 14
  %s29 = sld [smem:[%s28]]
  %s30 = scalar_lea.smem %s0, 15
  %s31 = sld [smem:[%s30]]
  %s32 = scalar_lea.smem %s0, 16
  %s33 = sld [smem:[%s32]]
  %s34 = scalar_lea.smem %s0, 17
  %s35 = sld [smem:[%s34]]
  %s36 = scalar_lea.smem %s0, 18
  %s37 = sld [smem:[%s36]]
  %s38 = scalar_lea.smem %s0, 19
  %s39 = sld [smem:[%s38]]
  %s40 = scalar_lea.smem %s0, 20
  %s41 = sld [smem:[%s40]]
  %s42 = scalar_lea.smem %s0, 21
  %s43 = sld [smem:[%s42]]
  %s44 = scalar_lea.smem %s0, 22
  %s45 = sld [smem:[%s44]]
  %s46 = scalar_lea.smem %s0, 23
  %s47 = sld [smem:[%s46]]
  %s48 = scalar_lea.smem %s0, 24
  %s49 = sld [smem:[%s48]]
  %s50 = scalar_lea.smem %s0, 25
  %s51 = sld [smem:[%s50]]
  %s52 = scalar_lea.smem %s0, 26
  %s53 = sld [smem:[%s52]]
  %s54 = scalar_lea.smem %s0, 27
  %s55 = sld [smem:[%s54]]
  %s56 = scalar_lea.smem %s0, 28
  %s57 = sld [smem:[%s56]]
  %s58 = scalar_lea.smem %s0, 29
  %s59 = sld [smem:[%s58]]
  %s60 = scalar_lea.smem %s0, 30
  %s61 = sld [smem:[%s60]]
  %s62 = scalar_lea.smem %s0, 31
  %s63 = sld [smem:[%s62]]
  %s64 = scalar_lea.smem %s0, 32
  %s65 = sld [smem:[%s64]]
  %s66 = scalar_lea.smem %s0, 33
  %s67 = sld [smem:[%s66]]
  %s68 = scalar_lea.smem %s0, 34
  %s69 = sld [smem:[%s68]]
  %s70 = sld [smem:[#allocation0]]
  $region198: #{tpu_custom_call.1} parent=0
    _
  %s72 = ssub.s32 1, %s70
  %s73 = scalar_select 0, %s72, %s70
  $region1: #{tpu_custom_call.1} parent=0
    #allocation2 [shape = 'u8[1024]{0}', space=vmem, size = 0x400, scoped, tag = 'input window, operand 1, single buffered']
    #allocation3 [shape = 's32[1]{0}', space=sflag, size = 0x4, scoped, tag = 'scoped memory for tpu_custom_call.1']
    #allocation4 [shape = 's32[1]{0}', space=sflag, size = 0x4, scoped, tag = 'scoped memory for tpu_custom_call.1']
    #allocation5 [shape = 'u8[4096]{0}', space=vmem, size = 0x1000, scoped, tag = 'input window, operand 2, single buffered']
    #allocation6 [shape = 's32[1]{0}', space=sflag, size = 0x4, scoped, tag = 'scoped memory for tpu_custom_call.1']
    #allocation7 [shape = 'u8[512]{0}', space=vmem, size = 0x400, scoped, tag = 'input window, operand 5, single buffered']
    #allocation8 [shape = 'u8[512]{0}', space=vmem, size = 0x400, scoped, tag = 'input window, operand 7, single buffered']
    #allocation9 [shape = 's32[1]{0}', space=sflag, size = 0x4, scoped, tag = 'scoped memory for tpu_custom_call.1']
    #allocation10 [shape = 'u8[512]{0}', space=vmem, size = 0x400, scoped, tag = 'input window, operand 9, single buffered']
    #allocation11 [shape = 'u8[512]{0}', space=vmem, size = 0x400, scoped, tag = 'input window, operand 11, single buffered']
    #allocation12 [shape = 's32[1]{0}', space=sflag, size = 0x4, scoped, tag = 'scoped memory for tpu_custom_call.1']
    #allocation13 [shape = 'u8[512]{0}', space=vmem, size = 0x400, scoped, tag = 'input window, operand 12, single buffered']
    #allocation14 [shape = 'u8[512]{0}', space=vmem, size = 0x400, scoped, tag = 'input window, operand 13, single buffered']
    #allocation15 [shape = 's32[1]{0}', space=sflag, size = 0x4, scoped, tag = 'scoped memory for tpu_custom_call.1']
    #allocation16 [shape = 'u8[512]{0}', space=vmem, size = 0x400, scoped, tag = 'input window, operand 14, single buffered']
    #allocation17 [shape = 'u8[512]{0}', space=vmem, size = 0x400, scoped, tag = 'input window, operand 15, single buffered']
    #allocation18 [shape = 's32[1]{0}', space=sflag, size = 0x4, scoped, tag = 'scoped memory for tpu_custom_call.1']
    #allocation19 [shape = 'u8[512]{0}', space=vmem, size = 0x400, scoped, tag = 'input window, operand 17, single buffered']
    #allocation20 [shape = 'u8[512]{0}', space=vmem, size = 0x400, scoped, tag = 'input window, operand 19, single buffered']
    #allocation21 [shape = 's32[1]{0}', space=sflag, size = 0x4, scoped, tag = 'scoped memory for tpu_custom_call.1']
    #allocation22 [shape = 'u8[8192]{0}', space=vmem, size = 0x2000, scoped, tag = 'input window, operand 20, single buffered']
    #allocation23 [shape = 'u8[1024]{0}', space=vmem, size = 0x400, scoped, tag = 'output window, operand 0, single buffered']
    %74 = vsyncpa [#allocation3], 0
    %75 = vsyncpa [#allocation6], 0
    %76 = vsyncpa [#allocation9], 0
    %77 = vsyncpa [#allocation12], 0
    %78 = vsyncpa [#allocation15], 0
    %79 = vsyncpa [#allocation18], 0
    %80 = vsyncpa [#allocation21], 0
    %81 = vsyncpa [#allocation4], 0
    // Predicated region
    $region2: #{tpu_custom_call.1} parent=1 // pred_check
      _
    $region3: #{tpu_custom_call.1} parent=1 // pred_check_branch
      %83 = sbr.rel (0) target = $region5
    $region4: #{tpu_custom_call.1} parent=1 // pred_region
      _
    $region5: #{tpu_custom_call.1} parent=1 // pred_fallthru
      _
    // Predicated region
    $region6: #{tpu_custom_call.1} parent=1 // pred_check
      _
    $region7: #{tpu_custom_call.1} parent=1 // pred_check_branch
      %85 = sbr.rel (0) target = $region9
    $region8: #{tpu_custom_call.1} parent=1 // pred_region
      %87 = vsyncadd [#allocation3], 0
      %s89 = sshll.u32 %s3, 4
      %s90 = int_to_ptr.hbm [resolvable:$true] %s89
      %s91 = sshll.u32 [#allocation2], 4
      %s92 = int_to_ptr.vmem [resolvable:$true] %s91
      %94 = dma.hbm_to_vmem [thread:$0]  %s90, 32, %s92, [#allocation3]
    $region9: #{tpu_custom_call.1} parent=1 // pred_fallthru
      _
    // Predicated region
    $region10: #{tpu_custom_call.1} parent=1 // pred_check
      _
    $region11: #{tpu_custom_call.1} parent=1 // pred_check_branch
      %96 = sbr.rel (0) target = $region13
    $region12: #{tpu_custom_call.1} parent=1 // pred_region
      %98 = vsyncadd [#allocation6], 0
      %s100 = sshll.u32 %s5, 4
      %s101 = int_to_ptr.hbm [resolvable:$true] %s100
      %s102 = sshll.u32 [#allocation5], 4
      %s103 = int_to_ptr.vmem [resolvable:$true] %s102
      %105 = dma.hbm_to_vmem [thread:$0]  %s101, 128, %s103, [#allocation6]
    $region13: #{tpu_custom_call.1} parent=1 // pred_fallthru
      _
    // Predicated region
    $region14: #{tpu_custom_call.1} parent=1 // pred_check
      _
    $region15: #{tpu_custom_call.1} parent=1 // pred_check_branch
      %107 = sbr.rel (0) target = $region17
    $region16: #{tpu_custom_call.1} parent=1 // pred_region
      _
    $region17: #{tpu_custom_call.1} parent=1 // pred_fallthru
      _
    // Predicated region
    $region18: #{tpu_custom_call.1} parent=1 // pred_check
      _
    $region19: #{tpu_custom_call.1} parent=1 // pred_check_branch
      %109 = sbr.rel (0) target = $region21
    $region20: #{tpu_custom_call.1} parent=1 // pred_region
      _
    $region21: #{tpu_custom_call.1} parent=1 // pred_fallthru
      _
    // Predicated region
    $region22: #{tpu_custom_call.1} parent=1 // pred_check
      _
    $region23: #{tpu_custom_call.1} parent=1 // pred_check_branch
      %111 = sbr.rel (0) target = $region25
    $region24: #{tpu_custom_call.1} parent=1 // pred_region
      %113 = vsyncadd [#allocation6], 0
      %s115 = sshll.u32 %s11, 4
      %s116 = int_to_ptr.hbm [resolvable:$true] %s115
      %s117 = sshll.u32 [#allocation7], 4
      %s118 = int_to_ptr.vmem [resolvable:$true] %s117
      %120 = dma.hbm_to_vmem [thread:$0]  %s116, 16, %s118, [#allocation6]
    $region25: #{tpu_custom_call.1} parent=1 // pred_fallthru
      _
    // Predicated region
    $region26: #{tpu_custom_call.1} parent=1 // pred_check
      _
    $region27: #{tpu_custom_call.1} parent=1 // pred_check_branch
      %122 = sbr.rel (0) target = $region29
    $region28: #{tpu_custom_call.1} parent=1 // pred_region
      _
    $region29: #{tpu_custom_call.1} parent=1 // pred_fallthru
      _
    // Predicated region
    $region30: #{tpu_custom_call.1} parent=1 // pred_check
      _
    $region31: #{tpu_custom_call.1} parent=1 // pred_check_branch
      %124 = sbr.rel (0) target = $region33
    $region32: #{tpu_custom_call.1} parent=1 // pred_region
      %126 = vsyncadd [#allocation9], 0
      %s128 = sshll.u32 %s15, 4
      %s129 = int_to_ptr.hbm [resolvable:$true] %s128
      %s130 = sshll.u32 [#allocation8], 4
      %s131 = int_to_ptr.vmem [resolvable:$true] %s130
      %133 = dma.hbm_to_vmem [thread:$0]  %s129, 16, %s131, [#allocation9]
    $region33: #{tpu_custom_call.1} parent=1 // pred_fallthru
      _
    // Predicated region
    $region34: #{tpu_custom_call.1} parent=1 // pred_check
      _
    $region35: #{tpu_custom_call.1} parent=1 // pred_check_branch
      %135 = sbr.rel (0) target = $region37
    $region36: #{tpu_custom_call.1} parent=1 // pred_region
      _
    $region37: #{tpu_custom_call.1} parent=1 // pred_fallthru
      _
    // Predicated region
    $region38: #{tpu_custom_call.1} parent=1 // pred_check
      _
    $region39: #{tpu_custom_call.1} parent=1 // pred_check_branch
      %137 = sbr.rel (0) target = $region41
    $region40: #{tpu_custom_call.1} parent=1 // pred_region
      %139 = vsyncadd [#allocation9], 0
      %s141 = sshll.u32 %s19, 4
      %s142 = int_to_ptr.hbm [resolvable:$true] %s141
      %s143 = sshll.u32 [#allocation10], 4
      %s144 = int_to_ptr.vmem [resolvable:$true] %s143
      %146 = dma.hbm_to_vmem [thread:$0]  %s142, 16, %s144, [#allocation9]
    $region41: #{tpu_custom_call.1} parent=1 // pred_fallthru
      _
    // Predicated region
    $region42: #{tpu_custom_call.1} parent=1 // pred_check
      _
    $region43: #{tpu_custom_call.1} parent=1 // pred_check_branch
      %148 = sbr.rel (0) target = $region45
    $region44: #{tpu_custom_call.1} parent=1 // pred_region
      _
    $region45: #{tpu_custom_call.1} parent=1 // pred_fallthru
      _
    // Predicated region
    $region46: #{tpu_custom_call.1} parent=1 // pred_check
      _
    $region47: #{tpu_custom_call.1} parent=1 // pred_check_branch
      %150 = sbr.rel (0) target = $region49
    $region48: #{tpu_custom_call.1} parent=1 // pred_region
      %152 = vsyncadd [#allocation12], 0
      %s154 = sshll.u32 %s23, 4
      %s155 = int_to_ptr.hbm [resolvable:$true] %s154
      %s156 = sshll.u32 [#allocation11], 4
      %s157 = int_to_ptr.vmem [resolvable:$true] %s156
      %159 = dma.hbm_to_vmem [thread:$0]  %s155, 16, %s157, [#allocation12]
    $region49: #{tpu_custom_call.1} parent=1 // pred_fallthru
      _
    // Predicated region
    $region50: #{tpu_custom_call.1} parent=1 // pred_check
      _
    $region51: #{tpu_custom_call.1} parent=1 // pred_check_branch
      %161 = sbr.rel (0) target = $region53
    $region52: #{tpu_custom_call.1} parent=1 // pred_region
      %163 = vsyncadd [#allocation12], 0
      %s165 = sshll.u32 %s25, 4
      %s166 = int_to_ptr.hbm [resolvable:$true] %s165
      %s167 = sshll.u32 [#allocation13], 4
      %s168 = int_to_ptr.vmem [resolvable:$true] %s167
      %170 = dma.hbm_to_vmem [thread:$0]  %s166, 16, %s168, [#allocation12]
    $region53: #{tpu_custom_call.1} parent=1 // pred_fallthru
      _
    // Predicated region
    $region54: #{tpu_custom_call.1} parent=1 // pred_check
      _
    $region55: #{tpu_custom_call.1} parent=1 // pred_check_branch
      %172 = sbr.rel (0) target = $region57
    $region56: #{tpu_custom_call.1} parent=1 // pred_region
      %174 = vsyncadd [#allocation15], 0
      %s176 = sshll.u32 %s27, 4
      %s177 = int_to_ptr.hbm [resolvable:$true] %s176
      %s178 = sshll.u32 [#allocation14], 4
      %s179 = int_to_ptr.vmem [resolvable:$true] %s178
      %181 = dma.hbm_to_vmem [thread:$0]  %s177, 16, %s179, [#allocation15]
    $region57: #{tpu_custom_call.1} parent=1 // pred_fallthru
      _
    // Predicated region
    $region58: #{tpu_custom_call.1} parent=1 // pred_check
      _
    $region59: #{tpu_custom_call.1} parent=1 // pred_check_branch
      %183 = sbr.rel (0) target = $region61
    $region60: #{tpu_custom_call.1} parent=1 // pred_region
      %185 = vsyncadd [#allocation15], 0
      %s187 = sshll.u32 %s29, 4
      %s188 = int_to_ptr.hbm [resolvable:$true] %s187
      %s189 = sshll.u32 [#allocation16], 4
      %s190 = int_to_ptr.vmem [resolvable:$true] %s189
      %192 = dma.hbm_to_vmem [thread:$0]  %s188, 16, %s190, [#allocation15]
    $region61: #{tpu_custom_call.1} parent=1 // pred_fallthru
      _
    // Predicated region
    $region62: #{tpu_custom_call.1} parent=1 // pred_check
      _
    $region63: #{tpu_custom_call.1} parent=1 // pred_check_branch
      %194 = sbr.rel (0) target = $region65
    $region64: #{tpu_custom_call.1} parent=1 // pred_region
      %196 = vsyncadd [#allocation18], 0
      %s198 = sshll.u32 %s31, 4
      %s199 = int_to_ptr.hbm [resolvable:$true] %s198
      %s200 = sshll.u32 [#allocation17], 4
      %s201 = int_to_ptr.vmem [resolvable:$true] %s200
      %203 = dma.hbm_to_vmem [thread:$0]  %s199, 16, %s201, [#allocation18]
    $region65: #{tpu_custom_call.1} parent=1 // pred_fallthru
      _
    // Predicated region
    $region66: #{tpu_custom_call.1} parent=1 // pred_check
      _
    $region67: #{tpu_custom_call.1} parent=1 // pred_check_branch
      %205 = sbr.rel (0) target = $region69
    $region68: #{tpu_custom_call.1} parent=1 // pred_region
      _
    $region69: #{tpu_custom_call.1} parent=1 // pred_fallthru
      _
    // Predicated region
    $region70: #{tpu_custom_call.1} parent=1 // pred_check
      _
    $region71: #{tpu_custom_call.1} parent=1 // pred_check_branch
      %207 = sbr.rel (0) target = $region73
    $region72: #{tpu_custom_call.1} parent=1 // pred_region
      %209 = vsyncadd [#allocation18], 0
      %s211 = sshll.u32 %s35, 4
      %s212 = int_to_ptr.hbm [resolvable:$true] %s211
      %s213 = sshll.u32 [#allocation19], 4
      %s214 = int_to_ptr.vmem [resolvable:$true] %s213
      %216 = dma.hbm_to_vmem [thread:$0]  %s212, 16, %s214, [#allocation18]
    $region73: #{tpu_custom_call.1} parent=1 // pred_fallthru
      _
    // Predicated region
    $region74: #{tpu_custom_call.1} parent=1 // pred_check
      _
    $region75: #{tpu_custom_call.1} parent=1 // pred_check_branch
      %218 = sbr.rel (0) target = $region77
    $region76: #{tpu_custom_call.1} parent=1 // pred_region
      _
    $region77: #{tpu_custom_call.1} parent=1 // pred_fallthru
      _
    // Predicated region
    $region78: #{tpu_custom_call.1} parent=1 // pred_check
      _
    $region79: #{tpu_custom_call.1} parent=1 // pred_check_branch
      %220 = sbr.rel (0) target = $region81
    $region80: #{tpu_custom_call.1} parent=1 // pred_region
      %222 = vsyncadd [#allocation21], 0
      %s224 = sshll.u32 %s39, 4
      %s225 = int_to_ptr.hbm [resolvable:$true] %s224
      %s226 = sshll.u32 [#allocation20], 4
      %s227 = int_to_ptr.vmem [resolvable:$true] %s226
      %229 = dma.hbm_to_vmem [thread:$0]  %s225, 16, %s227, [#allocation21]
    $region81: #{tpu_custom_call.1} parent=1 // pred_fallthru
      _
    // Predicated region
    $region82: #{tpu_custom_call.1} parent=1 // pred_check
      _
    $region83: #{tpu_custom_call.1} parent=1 // pred_check_branch
      %231 = sbr.rel (0) target = $region85
    $region84: #{tpu_custom_call.1} parent=1 // pred_region
      %233 = vsyncadd [#allocation21], 0
      %s234 = sshll.u32 %s41, 4
      %s235 = int_to_ptr.hbm [resolvable:$true] %s234
      %s236 = sshll.u32 [#allocation22], 4
      %s237 = int_to_ptr.vmem [resolvable:$true] %s236
      %242 = dma.hbm_to_vmem [thread:$0]  %s235, 256, %s237, [#allocation21], 128, 128, 8
    $region85: #{tpu_custom_call.1} parent=1 // pred_fallthru
      _
    // Predicated region
    $region86: #{tpu_custom_call.1} parent=1 // pred_check
      _
    $region87: #{tpu_custom_call.1} parent=1 // pred_check_branch
      %244 = sbr.rel (0) target = $region89
    $region88: #{tpu_custom_call.1} parent=1 // pred_region
      _
    $region89: #{tpu_custom_call.1} parent=1 // pred_fallthru
      _
    // Predicated region
    $region90: #{tpu_custom_call.1} parent=1 // pred_check
      _
    $region91: #{tpu_custom_call.1} parent=1 // pred_check_branch
      %246 = sbr.rel (0) target = $region93
    $region92: #{tpu_custom_call.1} parent=1 // pred_region
      _
    $region93: #{tpu_custom_call.1} parent=1 // pred_fallthru
      _
    // Predicated region
    $region94: #{tpu_custom_call.1} parent=1 // pred_check
      _
    $region95: #{tpu_custom_call.1} parent=1 // pred_check_branch
      %248 = sbr.rel (0) target = $region97
    $region96: #{tpu_custom_call.1} parent=1 // pred_region
      _
    $region97: #{tpu_custom_call.1} parent=1 // pred_fallthru
      _
    // Predicated region
    $region98: #{tpu_custom_call.1} parent=1 // pred_check
      _
    $region99: #{tpu_custom_call.1} parent=1 // pred_check_branch
      %250 = sbr.rel (0) target = $region101
    $region100: #{tpu_custom_call.1} parent=1 // pred_region
      _
    $region101: #{tpu_custom_call.1} parent=1 // pred_fallthru
      _
    // Predicated region
    $region102: #{tpu_custom_call.1} parent=1 // pred_check
      _
    $region103: #{tpu_custom_call.1} parent=1 // pred_check_branch
      %252 = sbr.rel (0) target = $region105
    $region104: #{tpu_custom_call.1} parent=1 // pred_region
      _
    $region105: #{tpu_custom_call.1} parent=1 // pred_fallthru
      _
    // Predicated region
    $region106: #{tpu_custom_call.1} parent=1 // pred_check
      _
    $region107: #{tpu_custom_call.1} parent=1 // pred_check_branch
      %254 = sbr.rel (0) target = $region109
    $region108: #{tpu_custom_call.1} parent=1 // pred_region
      _
    $region109: #{tpu_custom_call.1} parent=1 // pred_fallthru
      _
    // Predicated region
    $region110: #{tpu_custom_call.1} parent=1 // pred_check
      _
    $region111: #{tpu_custom_call.1} parent=1 // pred_check_branch
      %256 = sbr.rel (0) target = $region113
    $region112: #{tpu_custom_call.1} parent=1 // pred_region
      _
    $region113: #{tpu_custom_call.1} parent=1 // pred_fallthru
      _
    // Predicated region
    $region114: #{tpu_custom_call.1} parent=1 // pred_check
      _
    $region115: #{tpu_custom_call.1} parent=1 // pred_check_branch
      %258 = sbr.rel (0) target = $region117
    $region116: #{tpu_custom_call.1} parent=1 // pred_region
      _
    $region117: #{tpu_custom_call.1} parent=1 // pred_fallthru
      _
    // Predicated region
    $region118: #{tpu_custom_call.1} parent=1 // pred_check
      _
    $region119: #{tpu_custom_call.1} parent=1 // pred_check_branch
      %260 = sbr.rel (0) target = $region121
    $region120: #{tpu_custom_call.1} parent=1 // pred_region
      _
    $region121: #{tpu_custom_call.1} parent=1 // pred_fallthru
      _
    // Predicated region
    $region122: #{tpu_custom_call.1} parent=1 // pred_check
      _
    $region123: #{tpu_custom_call.1} parent=1 // pred_check_branch
      %262 = sbr.rel (0) target = $region125
    $region124: #{tpu_custom_call.1} parent=1 // pred_region
      _
    $region125: #{tpu_custom_call.1} parent=1 // pred_fallthru
      _
    // Predicated region
    $region126: #{tpu_custom_call.1} parent=1 // pred_check
      _
    $region127: #{tpu_custom_call.1} parent=1 // pred_check_branch
      %264 = sbr.rel (0) target = $region129
    $region128: #{tpu_custom_call.1} parent=1 // pred_region
      _
    $region129: #{tpu_custom_call.1} parent=1 // pred_fallthru
      _
    // Predicated region
    $region130: #{tpu_custom_call.1} parent=1 // pred_check
      _
    $region131: #{tpu_custom_call.1} parent=1 // pred_check_branch
      %266 = sbr.rel (0) target = $region133
    $region132: #{tpu_custom_call.1} parent=1 // pred_region
      _
    $region133: #{tpu_custom_call.1} parent=1 // pred_fallthru
      _
    // Predicated region
    $region134: #{tpu_custom_call.1} parent=1 // pred_check
      _
    $region135: #{tpu_custom_call.1} parent=1 // pred_check_branch
      %268 = sbr.rel (0) target = $region137
    $region136: #{tpu_custom_call.1} parent=1 // pred_region
      _
    $region137: #{tpu_custom_call.1} parent=1 // pred_fallthru
      _
    // Predicated region
    $region138: #{tpu_custom_call.1} parent=1 // pred_check
      _
    $region139: #{tpu_custom_call.1} parent=1 // pred_check_branch
      %270 = sbr.rel (0) target = $region141
    $region140: #{tpu_custom_call.1} parent=1 // pred_region
      %272 = dma.done [#allocation3], 32
    $region141: #{tpu_custom_call.1} parent=1 // pred_fallthru
      _
    // Predicated region
    $region142: #{tpu_custom_call.1} parent=1 // pred_check
      _
    $region143: #{tpu_custom_call.1} parent=1 // pred_check_branch
      %274 = sbr.rel (0) target = $region145
    $region144: #{tpu_custom_call.1} parent=1 // pred_region
      %276 = dma.done [#allocation6], 128
    $region145: #{tpu_custom_call.1} parent=1 // pred_fallthru
      _
    // Predicated region
    $region146: #{tpu_custom_call.1} parent=1 // pred_check
      _
    $region147: #{tpu_custom_call.1} parent=1 // pred_check_branch
      %278 = sbr.rel (0) target = $region149
    $region148: #{tpu_custom_call.1} parent=1 // pred_region
      %280 = dma.done [#allocation6], 16
    $region149: #{tpu_custom_call.1} parent=1 // pred_fallthru
      _
    // Predicated region
    $region150: #{tpu_custom_call.1} parent=1 // pred_check
      _
    $region151: #{tpu_custom_call.1} parent=1 // pred_check_branch
      %282 = sbr.rel (0) target = $region153
    $region152: #{tpu_custom_call.1} parent=1 // pred_region
      %284 = dma.done [#allocation9], 16
    $region153: #{tpu_custom_call.1} parent=1 // pred_fallthru
      _
    // Predicated region
    $region154: #{tpu_custom_call.1} parent=1 // pred_check
      _
    $region155: #{tpu_custom_call.1} parent=1 // pred_check_branch
      %286 = sbr.rel (0) target = $region157
    $region156: #{tpu_custom_call.1} parent=1 // pred_region
      %288 = dma.done [#allocation9], 16
    $region157: #{tpu_custom_call.1} parent=1 // pred_fallthru
      _
    // Predicated region
    $region158: #{tpu_custom_call.1} parent=1 // pred_check
      _
    $region159: #{tpu_custom_call.1} parent=1 // pred_check_branch
      %290 = sbr.rel (0) target = $region161
    $region160: #{tpu_custom_call.1} parent=1 // pred_region
      %292 = dma.done [#allocation12], 16
    $region161: #{tpu_custom_call.1} parent=1 // pred_fallthru
      _
    // Predicated region
    $region162: #{tpu_custom_call.1} parent=1 // pred_check
      _
    $region163: #{tpu_custom_call.1} parent=1 // pred_check_branch
      %294 = sbr.rel (0) target = $region165
    $region164: #{tpu_custom_call.1} parent=1 // pred_region
      %296 = dma.done [#allocation12], 16
    $region165: #{tpu_custom_call.1} parent=1 // pred_fallthru
      _
    // Predicated region
    $region166: #{tpu_custom_call.1} parent=1 // pred_check
      _
    $region167: #{tpu_custom_call.1} parent=1 // pred_check_branch
      %298 = sbr.rel (0) target = $region169
    $region168: #{tpu_custom_call.1} parent=1 // pred_region
      %300 = dma.done [#allocation15], 16
    $region169: #{tpu_custom_call.1} parent=1 // pred_fallthru
      _
    // Predicated region
    $region170: #{tpu_custom_call.1} parent=1 // pred_check
      _
    $region171: #{tpu_custom_call.1} parent=1 // pred_check_branch
      %302 = sbr.rel (0) target = $region173
    $region172: #{tpu_custom_call.1} parent=1 // pred_region
      %304 = dma.done [#allocation15], 16
    $region173: #{tpu_custom_call.1} parent=1 // pred_fallthru
      _
    // Predicated region
    $region174: #{tpu_custom_call.1} parent=1 // pred_check
      _
    $region175: #{tpu_custom_call.1} parent=1 // pred_check_branch
      %306 = sbr.rel (0) target = $region177
    $region176: #{tpu_custom_call.1} parent=1 // pred_region
      %308 = dma.done [#allocation18], 16
    $region177: #{tpu_custom_call.1} parent=1 // pred_fallthru
      _
    // Predicated region
    $region178: #{tpu_custom_call.1} parent=1 // pred_check
      _
    $region179: #{tpu_custom_call.1} parent=1 // pred_check_branch
      %310 = sbr.rel (0) target = $region181
    $region180: #{tpu_custom_call.1} parent=1 // pred_region
      %312 = dma.done [#allocation18], 16
    $region181: #{tpu_custom_call.1} parent=1 // pred_fallthru
      _
    // Predicated region
    $region182: #{tpu_custom_call.1} parent=1 // pred_check
      _
    $region183: #{tpu_custom_call.1} parent=1 // pred_check_branch
      %314 = sbr.rel (0) target = $region185
    $region184: #{tpu_custom_call.1} parent=1 // pred_region
      %316 = dma.done [#allocation21], 16
    $region185: #{tpu_custom_call.1} parent=1 // pred_fallthru
      _
    // Predicated region
    $region186: #{tpu_custom_call.1} parent=1 // pred_check
      _
    $region187: #{tpu_custom_call.1} parent=1 // pred_check_branch
      %318 = sbr.rel (0) target = $region189
    $region188: #{tpu_custom_call.1} parent=1 // pred_region
      %320 = dma.done [#allocation21], 256
    $region189: #{tpu_custom_call.1} parent=1 // pred_fallthru
      _
    %v321 = vlaneseq
    %v322 = vshrl.u32 %v321, 7
    %v323 = vlaneseq
    %v324 = vand.u32 %v323, 127
    %vm325 = vcmp.le.s32.totalorder %v324, %v322
    %v326 = vsel %vm325, 0.0, -1e+30
    %v327 = vld [vmem:[%s1] sm:$0xff]
    %v328 = vld [vmem:[%s1 + $0x8] sm:$0xff]
    %v329 = vld [vmem:[#allocation5] sm:$0x3f]
    %v330 = vld [vmem:[%s7] sm:$0x1]
    %v332 = vperm.slane %v330, 0
    %vm334 = vcmask 48128
    %v336 = vsel %vm334, %v327, 0
    %v339 = vsel %vm334, %v328, 0
    %vm341 = vcmask 1045504
    %v343 = vsel %vm341, %v329, 0
    %345 = vmatpush.msra.mxu0 0.0
    %346 = vmatpush.msra.mxu0 0.0
    %347 = vmatpush.msra.mxu0 0.0
    %348 = vmatpush.msra.mxu0 0.0
    %349 = vmatpush.msra.mxu0 0.0
    %350 = vmatpush.msra.mxu0 0.0
    %351 = vmatpush.msra.mxu0 0.0
    %352 = vmatpush.msra.mxu0 0.0
    %353 = vmatpush.msra.mxu0 0.0
    %354 = vmatpush.msra.mxu0 0.0
    %355 = vmatpush.msra.mxu0 0.0
    %356 = vmatpush.msra.mxu0 0.0
    %357 = vmatpush.msra.mxu0 0.0
    %358 = vmatpush.msra.mxu0 0.0
    %359 = vmatpush.msra.mxu0 0.0
    %360 = vmatpush.msra.mxu0 %v343
    %361 = vmatmul.f32.gmra.mxu0 %v336
    %v362 = vpop.f32.mrf.mxu0
    %v363 = vadd.f32 %v332, %v362
    %364 = vmatmul.f32.gmra.mxu0 %v339
    %v365 = vpop.f32.mrf.mxu0
    %v366 = vadd.f32 %v332, %v365
    %367 = vdwg.mxu0
    %v368 = vmax.f32 %v363, 0.0
    %v369 = vmax.f32 %v366, 0.0
    %v370 = vld [vmem:[%s9] sm:$0xff]
    %v371 = vld [vmem:[%s9 + $0x8] sm:$0xff]
    %v372 = vld [vmem:[#allocation7] sm:$0x1]
    %v374 = vperm.slane %v372, 0
    %vm376 = vcmask 130048
    %v378 = vsel %vm376, %v368, 0
    %v381 = vsel %vm376, %v369, 0
    %383 = vmatpush.msra.mxu0 0.0
    %384 = vmatpush.msra.mxu0 0.0
    %385 = vmatpush.msra.mxu0 0.0
    %386 = vmatpush.msra.mxu0 0.0
    %387 = vmatpush.msra.mxu0 0.0
    %388 = vmatpush.msra.mxu0 0.0
    %389 = vmatpush.msra.mxu0 0.0
    %390 = vmatpush.msra.mxu0 0.0
    %391 = vmatpush.msra.mxu0 0.0
    %392 = vmatpush.msra.mxu0 0.0
    %393 = vmatpush.msra.mxu0 0.0
    %394 = vmatpush.msra.mxu0 0.0
    %395 = vmatpush.msra.mxu0 0.0
    %396 = vmatpush.msra.mxu0 0.0
    %397 = vmatpush.msra.mxu0 %v371
    %398 = vmatpush.msra.mxu0 %v370
    %399 = vmatmul.f32.gmra.mxu0 %v378
    %v400 = vpop.f32.mrf.mxu0
    %v401 = vadd.f32 %v374, %v400
    %402 = vmatmul.f32.gmra.mxu0 %v381
    %v403 = vpop.f32.mrf.mxu0
    %v404 = vadd.f32 %v374, %v403
    %405 = vdwg.mxu0
    %v406 = vmax.f32 %v401, 0.0
    %v407 = vmax.f32 %v404, 0.0
    %409 = vrot.lane.b32.xlu0 %v406, 112
    %v410 = vpop.permute.xlu0 %409
    %vm411 = vcmask 64512
    %v412 = vsel %vm411, %v406, 0
    %v414 = vsel %vm411, %v410, 0
    %416 = vmatpush.xpose.msra.mxu0 0.0
    %417 = vmatpush.xpose.msra.mxu0 0.0
    %418 = vmatpush.xpose.msra.mxu0 0.0
    %419 = vmatpush.xpose.msra.mxu0 0.0
    %420 = vmatpush.xpose.msra.mxu0 0.0
    %421 = vmatpush.xpose.msra.mxu0 0.0
    %422 = vmatpush.xpose.msra.mxu0 0.0
    %423 = vmatpush.xpose.msra.mxu0 0.0
    %424 = vmatpush.xpose.msra.mxu0 0.0
    %425 = vmatpush.xpose.msra.mxu0 0.0
    %426 = vmatpush.xpose.msra.mxu0 0.0
    %427 = vmatpush.xpose.msra.mxu0 0.0
    %428 = vmatpush.xpose.msra.mxu0 0.0
    %429 = vmatpush.xpose.msra.mxu0 0.0
    %430 = vmatpush.xpose.msra.mxu0 0.0
    %431 = vmatpush.xpose.msra.mxu0 %v414
    %432 = vmatmul.f32.gmra.mxu0 %v412
    %v433 = vpop.f32.mrf.mxu0
    %v434 = vadd.f32 0.0, %v433
    %435 = vdwg.mxu0
    %v436 = vmul.f32 %v434, 0.35355338
    %v437 = vadd.f32 %v436, %v326
    %v438 = vsel %vm411, %v437, -inf
    %439 = vmax.xlane.f32.xlu0 %v438
    %v440 = vpop.xlane.xlu0 %439
    %v441 = vsub.f32 %v437, %v440
    %v442 = vmul.f32 %v441, 1.442695
    %v443 = vpow.pop %v442
    %v444 = vsel %vm411, %v443, 0.0
    %445 = vadd.xlane.f32.xlu0 %v444
    %v446 = vpop.xlane.xlu0 %445
    %v447 = vrcp.pop %v446
    %v448 = vmul.f32 %v443, %v447
    %449 = vrot.lane.b32.xlu0 %v406, 96
    %v450 = vpop.permute.xlu0 %449
    %v453 = vsel %vm411, %v448, 0
    %455 = vmatpush.msra.mxu0 0.0
    %456 = vmatpush.msra.mxu0 0.0
    %457 = vmatpush.msra.mxu0 0.0
    %458 = vmatpush.msra.mxu0 0.0
    %459 = vmatpush.msra.mxu0 0.0
    %460 = vmatpush.msra.mxu0 0.0
    %461 = vmatpush.msra.mxu0 0.0
    %462 = vmatpush.msra.mxu0 0.0
    %463 = vmatpush.msra.mxu0 0.0
    %464 = vmatpush.msra.mxu0 0.0
    %465 = vmatpush.msra.mxu0 0.0
    %466 = vmatpush.msra.mxu0 0.0
    %467 = vmatpush.msra.mxu0 0.0
    %468 = vmatpush.msra.mxu0 0.0
    %469 = vmatpush.msra.mxu0 0.0
    %470 = vmatpush.msra.mxu0 %v450
    %471 = vmatmul.f32.gmra.mxu0 %v453
    %v472 = vpop.f32.mrf.mxu0
    %v473 = vadd.f32 0.0, %v472
    %474 = vdwg.mxu0
    %475 = vrot.lane.b32.xlu0 %v406, 120
    %v476 = vpop.permute.xlu0 %475
    %477 = vrot.lane.b32.xlu0 %v406, 104
    %v478 = vpop.permute.xlu0 %477
    %v479 = vsel %vm411, %v476, 0
    %v481 = vsel %vm411, %v478, 0
    %483 = vmatpush.xpose.msra.mxu0 0.0
    %484 = vmatpush.xpose.msra.mxu0 0.0
    %485 = vmatpush.xpose.msra.mxu0 0.0
    %486 = vmatpush.xpose.msra.mxu0 0.0
    %487 = vmatpush.xpose.msra.mxu0 0.0
    %488 = vmatpush.xpose.msra.mxu0 0.0
    %489 = vmatpush.xpose.msra.mxu0 0.0
    %490 = vmatpush.xpose.msra.mxu0 0.0
    %491 = vmatpush.xpose.msra.mxu0 0.0
    %492 = vmatpush.xpose.msra.mxu0 0.0
    %493 = vmatpush.xpose.msra.mxu0 0.0
    %494 = vmatpush.xpose.msra.mxu0 0.0
    %495 = vmatpush.xpose.msra.mxu0 0.0
    %496 = vmatpush.xpose.msra.mxu0 0.0
    %497 = vmatpush.xpose.msra.mxu0 0.0
    %498 = vmatpush.xpose.msra.mxu0 %v481
    %499 = vmatmul.f32.gmra.mxu0 %v479
    %v500 = vpop.f32.mrf.mxu0
    %v501 = vadd.f32 0.0, %v500
    %502 = vdwg.mxu0
    %v503 = vmul.f32 %v501, 0.35355338
    %v504 = vadd.f32 %v503, %v326
    %v505 = vsel %vm411, %v504, -inf
    %506 = vmax.xlane.f32.xlu0 %v505
    %v507 = vpop.xlane.xlu0 %506
    %v508 = vsub.f32 %v504, %v507
    %v509 = vmul.f32 %v508, 1.442695
    %v510 = vpow.pop %v509
    %v511 = vsel %vm411, %v510, 0.0
    %512 = vadd.xlane.f32.xlu0 %v511
    %v513 = vpop.xlane.xlu0 %512
    %v514 = vrcp.pop %v513
    %v515 = vmul.f32 %v510, %v514
    %516 = vrot.lane.b32.xlu0 %v406, 88
    %v517 = vpop.permute.xlu0 %516
    %v520 = vsel %vm411, %v515, 0
    %522 = vmatpush.msra.mxu0 0.0
    %523 = vmatpush.msra.mxu0 0.0
    %524 = vmatpush.msra.mxu0 0.0
    %525 = vmatpush.msra.mxu0 0.0
    %526 = vmatpush.msra.mxu0 0.0
    %527 = vmatpush.msra.mxu0 0.0
    %528 = vmatpush.msra.mxu0 0.0
    %529 = vmatpush.msra.mxu0 0.0
    %530 = vmatpush.msra.mxu0 0.0
    %531 = vmatpush.msra.mxu0 0.0
    %532 = vmatpush.msra.mxu0 0.0
    %533 = vmatpush.msra.mxu0 0.0
    %534 = vmatpush.msra.mxu0 0.0
    %535 = vmatpush.msra.mxu0 0.0
    %536 = vmatpush.msra.mxu0 0.0
    %537 = vmatpush.msra.mxu0 %v517
    %538 = vmatmul.f32.gmra.mxu0 %v520
    %v539 = vpop.f32.mrf.mxu0
    %v540 = vadd.f32 0.0, %v539
    %541 = vdwg.mxu0
    %543 = vrot.lane.b32.xlu0 %v540, 8
    %v544 = vpop.permute.xlu0 %543
    %v546 = vsel %vm411, %v473, %v544
    %548 = vrot.lane.b32.xlu0 %v407, 112
    %v549 = vpop.permute.xlu0 %548
    %v550 = vsel %vm411, %v407, 0
    %v552 = vsel %vm411, %v549, 0
    %554 = vmatpush.xpose.msra.mxu0 0.0
    %555 = vmatpush.xpose.msra.mxu0 0.0
    %556 = vmatpush.xpose.msra.mxu0 0.0
    %557 = vmatpush.xpose.msra.mxu0 0.0
    %558 = vmatpush.xpose.msra.mxu0 0.0
    %559 = vmatpush.xpose.msra.mxu0 0.0
    %560 = vmatpush.xpose.msra.mxu0 0.0
    %561 = vmatpush.xpose.msra.mxu0 0.0
    %562 = vmatpush.xpose.msra.mxu0 0.0
    %563 = vmatpush.xpose.msra.mxu0 0.0
    %564 = vmatpush.xpose.msra.mxu0 0.0
    %565 = vmatpush.xpose.msra.mxu0 0.0
    %566 = vmatpush.xpose.msra.mxu0 0.0
    %567 = vmatpush.xpose.msra.mxu0 0.0
    %568 = vmatpush.xpose.msra.mxu0 0.0
    %569 = vmatpush.xpose.msra.mxu0 %v552
    %570 = vmatmul.f32.gmra.mxu0 %v550
    %v571 = vpop.f32.mrf.mxu0
    %v572 = vadd.f32 0.0, %v571
    %573 = vdwg.mxu0
    %v574 = vmul.f32 %v572, 0.35355338
    %v575 = vadd.f32 %v574, %v326
    %v576 = vsel %vm411, %v575, -inf
    %577 = vmax.xlane.f32.xlu0 %v576
    %v578 = vpop.xlane.xlu0 %577
    %v579 = vsub.f32 %v575, %v578
    %v580 = vmul.f32 %v579, 1.442695
    %v581 = vpow.pop %v580
    %v582 = vsel %vm411, %v581, 0.0
    %583 = vadd.xlane.f32.xlu0 %v582
    %v584 = vpop.xlane.xlu0 %583
    %v585 = vrcp.pop %v584
    %v586 = vmul.f32 %v581, %v585
    %587 = vrot.lane.b32.xlu0 %v407, 96
    %v588 = vpop.permute.xlu0 %587
    %v591 = vsel %vm411, %v586, 0
    %593 = vmatpush.msra.mxu0 0.0
    %594 = vmatpush.msra.mxu0 0.0
    %595 = vmatpush.msra.mxu0 0.0
    %596 = vmatpush.msra.mxu0 0.0
    %597 = vmatpush.msra.mxu0 0.0
    %598 = vmatpush.msra.mxu0 0.0
    %599 = vmatpush.msra.mxu0 0.0
    %600 = vmatpush.msra.mxu0 0.0
    %601 = vmatpush.msra.mxu0 0.0
    %602 = vmatpush.msra.mxu0 0.0
    %603 = vmatpush.msra.mxu0 0.0
    %604 = vmatpush.msra.mxu0 0.0
    %605 = vmatpush.msra.mxu0 0.0
    %606 = vmatpush.msra.mxu0 0.0
    %607 = vmatpush.msra.mxu0 0.0
    %608 = vmatpush.msra.mxu0 %v588
    %609 = vmatmul.f32.gmra.mxu0 %v591
    %v610 = vpop.f32.mrf.mxu0
    %v611 = vadd.f32 0.0, %v610
    %612 = vdwg.mxu0
    %613 = vrot.lane.b32.xlu0 %v407, 120
    %v614 = vpop.permute.xlu0 %613
    %615 = vrot.lane.b32.xlu0 %v407, 104
    %v616 = vpop.permute.xlu0 %615
    %v617 = vsel %vm411, %v614, 0
    %v619 = vsel %vm411, %v616, 0
    %621 = vmatpush.xpose.msra.mxu0 0.0
    %622 = vmatpush.xpose.msra.mxu0 0.0
    %623 = vmatpush.xpose.msra.mxu0 0.0
    %624 = vmatpush.xpose.msra.mxu0 0.0
    %625 = vmatpush.xpose.msra.mxu0 0.0
    %626 = vmatpush.xpose.msra.mxu0 0.0
    %627 = vmatpush.xpose.msra.mxu0 0.0
    %628 = vmatpush.xpose.msra.mxu0 0.0
    %629 = vmatpush.xpose.msra.mxu0 0.0
    %630 = vmatpush.xpose.msra.mxu0 0.0
    %631 = vmatpush.xpose.msra.mxu0 0.0
    %632 = vmatpush.xpose.msra.mxu0 0.0
    %633 = vmatpush.xpose.msra.mxu0 0.0
    %634 = vmatpush.xpose.msra.mxu0 0.0
    %635 = vmatpush.xpose.msra.mxu0 0.0
    %636 = vmatpush.xpose.msra.mxu0 %v619
    %637 = vmatmul.f32.gmra.mxu0 %v617
    %v638 = vpop.f32.mrf.mxu0
    %v639 = vadd.f32 0.0, %v638
    %640 = vdwg.mxu0
    %v641 = vmul.f32 %v639, 0.35355338
    %v642 = vadd.f32 %v641, %v326
    %v643 = vsel %vm411, %v642, -inf
    %644 = vmax.xlane.f32.xlu0 %v643
    %v645 = vpop.xlane.xlu0 %644
    %v646 = vsub.f32 %v642, %v645
    %v647 = vmul.f32 %v646, 1.442695
    %v648 = vpow.pop %v647
    %v649 = vsel %vm411, %v648, 0.0
    %650 = vadd.xlane.f32.xlu0 %v649
    %v651 = vpop.xlane.xlu0 %650
    %v652 = vrcp.pop %v651
    %v653 = vmul.f32 %v648, %v652
    %654 = vrot.lane.b32.xlu0 %v407, 88
    %v655 = vpop.permute.xlu0 %654
    %v658 = vsel %vm411, %v653, 0
    %660 = vmatpush.msra.mxu0 0.0
    %661 = vmatpush.msra.mxu0 0.0
    %662 = vmatpush.msra.mxu0 0.0
    %663 = vmatpush.msra.mxu0 0.0
    %664 = vmatpush.msra.mxu0 0.0
    %665 = vmatpush.msra.mxu0 0.0
    %666 = vmatpush.msra.mxu0 0.0
    %667 = vmatpush.msra.mxu0 0.0
    %668 = vmatpush.msra.mxu0 0.0
    %669 = vmatpush.msra.mxu0 0.0
    %670 = vmatpush.msra.mxu0 0.0
    %671 = vmatpush.msra.mxu0 0.0
    %672 = vmatpush.msra.mxu0 0.0
    %673 = vmatpush.msra.mxu0 0.0
    %674 = vmatpush.msra.mxu0 0.0
    %675 = vmatpush.msra.mxu0 %v655
    %676 = vmatmul.f32.gmra.mxu0 %v658
    %v677 = vpop.f32.mrf.mxu0
    %v678 = vadd.f32 0.0, %v677
    %679 = vdwg.mxu0
    %681 = vrot.lane.b32.xlu0 %v678, 8
    %v682 = vpop.permute.xlu0 %681
    %v684 = vsel %vm411, %v611, %v682
    %v685 = vld [vmem:[%s13] sm:$0xff]
    %v686 = vld [vmem:[%s13 + $0x8] sm:$0xff]
    %v687 = vld [vmem:[#allocation8] sm:$0x1]
    %v689 = vperm.slane %v687, 0
    %v692 = vsel %vm376, %v546, 0
    %v695 = vsel %vm376, %v684, 0
    %697 = vmatpush.msra.mxu0 0.0
    %698 = vmatpush.msra.mxu0 0.0
    %699 = vmatpush.msra.mxu0 0.0
    %700 = vmatpush.msra.mxu0 0.0
    %701 = vmatpush.msra.mxu0 0.0
    %702 = vmatpush.msra.mxu0 0.0
    %703 = vmatpush.msra.mxu0 0.0
    %704 = vmatpush.msra.mxu0 0.0
    %705 = vmatpush.msra.mxu0 0.0
    %706 = vmatpush.msra.mxu0 0.0
    %707 = vmatpush.msra.mxu0 0.0
    %708 = vmatpush.msra.mxu0 0.0
    %709 = vmatpush.msra.mxu0 0.0
    %710 = vmatpush.msra.mxu0 0.0
    %711 = vmatpush.msra.mxu0 %v686
    %712 = vmatpush.msra.mxu0 %v685
    %713 = vmatmul.f32.gmra.mxu0 %v692
    %v714 = vpop.f32.mrf.mxu0
    %v715 = vadd.f32 %v689, %v714
    %716 = vmatmul.f32.gmra.mxu0 %v695
    %v717 = vpop.f32.mrf.mxu0
    %v718 = vadd.f32 %v689, %v717
    %719 = vdwg.mxu0
    %v720 = vmax.f32 %v715, 0.0
    %v721 = vmax.f32 %v718, 0.0
    %v722 = vadd.f32 %v368, %v720
    %v723 = vadd.f32 %v369, %v721
    %v724 = vsel %vm376, %v722, 0.0
    %725 = vadd.xlane.f32.xlu0 %v724
    %v726 = vpop.xlane.xlu0 %725
    %v727 = vsel %vm376, %v723, 0.0
    %728 = vadd.xlane.f32.xlu0 %v727
    %v729 = vpop.xlane.xlu0 %728
    %v730 = vrcp.pop 16.0
    %v731 = vmul.f32 16.0, %v730
    %v732 = vsub.f32 1.0, %v731
    %v733 = vmul.f32 %v730, %v732
    %v734 = vadd.f32 %v730, %v733
    %vm735 = vweird.f32 %v730
    %v736 = vsel %vm735, %v730, %v734
    %v737 = vmul.f32 %v726, %v736
    %v738 = vmul.f32 %v729, %v736
    %v739 = vsub.f32 %v722, %v737
    %v740 = vsub.f32 %v723, %v738
    %v741 = vmul.f32 %v739, %v739
    %v742 = vmul.f32 %v740, %v740
    %v743 = vsel %vm376, %v741, 0.0
    %744 = vadd.xlane.f32.xlu0 %v743
    %v745 = vpop.xlane.xlu0 %744
    %v746 = vsel %vm376, %v742, 0.0
    %747 = vadd.xlane.f32.xlu0 %v746
    %v748 = vpop.xlane.xlu0 %747
    %v749 = vmul.f32 %v745, %v736
    %v750 = vmul.f32 %v748, %v736
    %v751 = vadd.f32 %v749, 1e-05
    %v752 = vadd.f32 %v750, 1e-05
    %v753 = vrsqrt.pop %v751
    %v754 = vmul.f32 %v753, %v751
    %v755 = vmul.f32 %v754, %v753
    %v756 = vmul.f32 0.5, %v755
    %v757 = vsub.f32 1.5, %v756
    %v758 = vmul.f32 %v753, %v757
    %vm759 = vweird.f32 %v751
    %vm760 = vweird.f32 %v753
    %vm761 = vmor %vm759, %vm760
    %v762 = vsel %vm761, %v753, %v758
    %v763 = vrsqrt.pop %v752
    %v764 = vmul.f32 %v763, %v752
    %v765 = vmul.f32 %v764, %v763
    %v766 = vmul.f32 0.5, %v765
    %v767 = vsub.f32 1.5, %v766
    %v768 = vmul.f32 %v763, %v767
    %vm769 = vweird.f32 %v752
    %vm770 = vweird.f32 %v763
    %vm771 = vmor %vm769, %vm770
    %v772 = vsel %vm771, %v763, %v768
    %v773 = vmul.f32 %v739, %v762
    %v774 = vmul.f32 %v740, %v772
    %v775 = vld [vmem:[#allocation13] sm:$0x1]
    %v777 = vperm.slane %v775, 0
    %v779 = vmul.f32 %v773, %v777
    %v780 = vmul.f32 %v774, %v777
    %v781 = vld [vmem:[#allocation14] sm:$0x1]
    %v783 = vperm.slane %v781, 0
    %v785 = vadd.f32 %v779, %v783
    %v786 = vadd.f32 %v780, %v783
    %v787 = vld [vmem:[%s17] sm:$0xff]
    %v788 = vld [vmem:[%s17 + $0x8] sm:$0xff]
    %v789 = vld [vmem:[#allocation10] sm:$0x1]
    %v791 = vperm.slane %v789, 0
    %v794 = vsel %vm376, %v785, 0
    %v797 = vsel %vm376, %v786, 0
    %799 = vmatpush.msra.mxu0 0.0
    %800 = vmatpush.msra.mxu0 0.0
    %801 = vmatpush.msra.mxu0 0.0
    %802 = vmatpush.msra.mxu0 0.0
    %803 = vmatpush.msra.mxu0 0.0
    %804 = vmatpush.msra.mxu0 0.0
    %805 = vmatpush.msra.mxu0 0.0
    %806 = vmatpush.msra.mxu0 0.0
    %807 = vmatpush.msra.mxu0 0.0
    %808 = vmatpush.msra.mxu0 0.0
    %809 = vmatpush.msra.mxu0 0.0
    %810 = vmatpush.msra.mxu0 0.0
    %811 = vmatpush.msra.mxu0 0.0
    %812 = vmatpush.msra.mxu0 0.0
    %813 = vmatpush.msra.mxu0 %v788
    %814 = vmatpush.msra.mxu0 %v787
    %815 = vmatmul.f32.gmra.mxu0 %v794
    %v816 = vpop.f32.mrf.mxu0
    %v817 = vadd.f32 %v791, %v816
    %818 = vmatmul.f32.gmra.mxu0 %v797
    %v819 = vpop.f32.mrf.mxu0
    %v820 = vadd.f32 %v791, %v819
    %821 = vdwg.mxu0
    %v822 = vmax.f32 %v817, 0.0
    %v823 = vmax.f32 %v820, 0.0
    %v824 = vld [vmem:[%s21] sm:$0xff]
    %v825 = vld [vmem:[%s21 + $0x8] sm:$0xff]
    %v826 = vld [vmem:[%s21 + $0x10] sm:$0xff]
    %v827 = vld [vmem:[%s21 + $0x18] sm:$0xff]
    %v828 = vld [vmem:[#allocation11] sm:$0x1]
    %v830 = vperm.slane %v828, 0
    %vm832 = vcmask 261120
    %v834 = vsel %vm832, %v822, 0
    %v837 = vsel %vm832, %v823, 0
    %839 = vmatpush.msra.mxu0 0.0
    %840 = vmatpush.msra.mxu0 0.0
    %841 = vmatpush.msra.mxu0 0.0
    %842 = vmatpush.msra.mxu0 0.0
    %843 = vmatpush.msra.mxu0 0.0
    %844 = vmatpush.msra.mxu0 0.0
    %845 = vmatpush.msra.mxu0 0.0
    %846 = vmatpush.msra.mxu0 0.0
    %847 = vmatpush.msra.mxu0 0.0
    %848 = vmatpush.msra.mxu0 0.0
    %849 = vmatpush.msra.mxu0 0.0
    %850 = vmatpush.msra.mxu0 0.0
    %851 = vmatpush.msra.mxu0 %v827
    %852 = vmatpush.msra.mxu0 %v826
    %853 = vmatpush.msra.mxu0 %v825
    %854 = vmatpush.msra.mxu0 %v824
    %855 = vmatmul.f32.gmra.mxu0 %v834
    %v856 = vpop.f32.mrf.mxu0
    %v857 = vadd.f32 %v830, %v856
    %858 = vmatmul.f32.gmra.mxu0 %v837
    %v859 = vpop.f32.mrf.mxu0
    %v860 = vadd.f32 %v830, %v859
    %861 = vdwg.mxu0
    %v862 = vadd.f32 %v785, %v857
    %v863 = vadd.f32 %v786, %v860
    %v864 = vsel %vm376, %v862, 0.0
    %865 = vadd.xlane.f32.xlu0 %v864
    %v866 = vpop.xlane.xlu0 %865
    %v867 = vsel %vm376, %v863, 0.0
    %868 = vadd.xlane.f32.xlu0 %v867
    %v869 = vpop.xlane.xlu0 %868
    %v870 = vmul.f32 %v866, %v736
    %v871 = vmul.f32 %v869, %v736
    %v872 = vsub.f32 %v862, %v870
    %v873 = vsub.f32 %v863, %v871
    %v874 = vmul.f32 %v872, %v872
    %v875 = vmul.f32 %v873, %v873
    %v876 = vsel %vm376, %v874, 0.0
    %877 = vadd.xlane.f32.xlu0 %v876
    %v878 = vpop.xlane.xlu0 %877
    %v879 = vsel %vm376, %v875, 0.0
    %880 = vadd.xlane.f32.xlu0 %v879
    %v881 = vpop.xlane.xlu0 %880
    %v882 = vmul.f32 %v878, %v736
    %v883 = vmul.f32 %v881, %v736
    %v884 = vadd.f32 %v882, 1e-05
    %v885 = vadd.f32 %v883, 1e-05
    %v886 = vrsqrt.pop %v884
    %v887 = vmul.f32 %v886, %v884
    %v888 = vmul.f32 %v887, %v886
    %v889 = vmul.f32 0.5, %v888
    %v890 = vsub.f32 1.5, %v889
    %v891 = vmul.f32 %v886, %v890
    %vm892 = vweird.f32 %v884
    %vm893 = vweird.f32 %v886
    %vm894 = vmor %vm892, %vm893
    %v895 = vsel %vm894, %v886, %v891
    %v896 = vrsqrt.pop %v885
    %v897 = vmul.f32 %v896, %v885
    %v898 = vmul.f32 %v897, %v896
    %v899 = vmul.f32 0.5, %v898
    %v900 = vsub.f32 1.5, %v899
    %v901 = vmul.f32 %v896, %v900
    %vm902 = vweird.f32 %v885
    %vm903 = vweird.f32 %v896
    %vm904 = vmor %vm902, %vm903
    %v905 = vsel %vm904, %v896, %v901
    %v906 = vmul.f32 %v872, %v895
    %v907 = vmul.f32 %v873, %v905
    %v908 = vld [vmem:[#allocation16] sm:$0x1]
    %v910 = vperm.slane %v908, 0
    %v912 = vmul.f32 %v906, %v910
    %v913 = vmul.f32 %v907, %v910
    %v914 = vld [vmem:[#allocation17] sm:$0x1]
    %v916 = vperm.slane %v914, 0
    %v918 = vadd.f32 %v912, %v916
    %v919 = vadd.f32 %v913, %v916
    %v920 = vld [vmem:[%s33] sm:$0xff]
    %v921 = vld [vmem:[%s33 + $0x8] sm:$0xff]
    %v922 = vld [vmem:[#allocation19] sm:$0x1]
    %v924 = vperm.slane %v922, 0
    %v927 = vsel %vm376, %v918, 0
    %v930 = vsel %vm376, %v919, 0
    %932 = vmatpush.msra.mxu0 0.0
    %933 = vmatpush.msra.mxu0 0.0
    %934 = vmatpush.msra.mxu0 0.0
    %935 = vmatpush.msra.mxu0 0.0
    %936 = vmatpush.msra.mxu0 0.0
    %937 = vmatpush.msra.mxu0 0.0
    %938 = vmatpush.msra.mxu0 0.0
    %939 = vmatpush.msra.mxu0 0.0
    %940 = vmatpush.msra.mxu0 0.0
    %941 = vmatpush.msra.mxu0 0.0
    %942 = vmatpush.msra.mxu0 0.0
    %943 = vmatpush.msra.mxu0 0.0
    %944 = vmatpush.msra.mxu0 0.0
    %945 = vmatpush.msra.mxu0 0.0
    %946 = vmatpush.msra.mxu0 %v921
    %947 = vmatpush.msra.mxu0 %v920
    %948 = vmatmul.f32.gmra.mxu0 %v927
    %v949 = vpop.f32.mrf.mxu0
    %v950 = vadd.f32 %v924, %v949
    %951 = vmatmul.f32.gmra.mxu0 %v930
    %v952 = vpop.f32.mrf.mxu0
    %v953 = vadd.f32 %v924, %v952
    %954 = vdwg.mxu0
    %v955 = vmax.f32 %v950, 0.0
    %v956 = vmax.f32 %v953, 0.0
    %958 = vrot.lane.b32.xlu0 %v955, 112
    %v959 = vpop.permute.xlu0 %958
    %v960 = vsel %vm411, %v955, 0
    %v962 = vsel %vm411, %v959, 0
    %964 = vmatpush.xpose.msra.mxu0 0.0
    %965 = vmatpush.xpose.msra.mxu0 0.0
    %966 = vmatpush.xpose.msra.mxu0 0.0
    %967 = vmatpush.xpose.msra.mxu0 0.0
    %968 = vmatpush.xpose.msra.mxu0 0.0
    %969 = vmatpush.xpose.msra.mxu0 0.0
    %970 = vmatpush.xpose.msra.mxu0 0.0
    %971 = vmatpush.xpose.msra.mxu0 0.0
    %972 = vmatpush.xpose.msra.mxu0 0.0
    %973 = vmatpush.xpose.msra.mxu0 0.0
    %974 = vmatpush.xpose.msra.mxu0 0.0
    %975 = vmatpush.xpose.msra.mxu0 0.0
    %976 = vmatpush.xpose.msra.mxu0 0.0
    %977 = vmatpush.xpose.msra.mxu0 0.0
    %978 = vmatpush.xpose.msra.mxu0 0.0
    %979 = vmatpush.xpose.msra.mxu0 %v962
    %980 = vmatmul.f32.gmra.mxu0 %v960
    %v981 = vpop.f32.mrf.mxu0
    %v982 = vadd.f32 0.0, %v981
    %983 = vdwg.mxu0
    %v984 = vmul.f32 %v982, 0.35355338
    %v985 = vadd.f32 %v984, %v326
    %v986 = vsel %vm411, %v985, -inf
    %987 = vmax.xlane.f32.xlu0 %v986
    %v988 = vpop.xlane.xlu0 %987
    %v989 = vsub.f32 %v985, %v988
    %v990 = vmul.f32 %v989, 1.442695
    %v991 = vpow.pop %v990
    %v992 = vsel %vm411, %v991, 0.0
    %993 = vadd.xlane.f32.xlu0 %v992
    %v994 = vpop.xlane.xlu0 %993
    %v995 = vrcp.pop %v994
    %v996 = vmul.f32 %v991, %v995
    %997 = vrot.lane.b32.xlu0 %v955, 96
    %v998 = vpop.permute.xlu0 %997
    %v1001 = vsel %vm411, %v996, 0
    %1003 = vmatpush.msra.mxu0 0.0
    %1004 = vmatpush.msra.mxu0 0.0
    %1005 = vmatpush.msra.mxu0 0.0
    %1006 = vmatpush.msra.mxu0 0.0
    %1007 = vmatpush.msra.mxu0 0.0
    %1008 = vmatpush.msra.mxu0 0.0
    %1009 = vmatpush.msra.mxu0 0.0
    %1010 = vmatpush.msra.mxu0 0.0
    %1011 = vmatpush.msra.mxu0 0.0
    %1012 = vmatpush.msra.mxu0 0.0
    %1013 = vmatpush.msra.mxu0 0.0
    %1014 = vmatpush.msra.mxu0 0.0
    %1015 = vmatpush.msra.mxu0 0.0
    %1016 = vmatpush.msra.mxu0 0.0
    %1017 = vmatpush.msra.mxu0 0.0
    %1018 = vmatpush.msra.mxu0 %v998
    %1019 = vmatmul.f32.gmra.mxu0 %v1001
    %v1020 = vpop.f32.mrf.mxu0
    %v1021 = vadd.f32 0.0, %v1020
    %1022 = vdwg.mxu0
    %1023 = vrot.lane.b32.xlu0 %v955, 120
    %v1024 = vpop.permute.xlu0 %1023
    %1025 = vrot.lane.b32.xlu0 %v955, 104
    %v1026 = vpop.permute.xlu0 %1025
    %v1027 = vsel %vm411, %v1024, 0
    %v1029 = vsel %vm411, %v1026, 0
    %1031 = vmatpush.xpose.msra.mxu0 0.0
    %1032 = vmatpush.xpose.msra.mxu0 0.0
    %1033 = vmatpush.xpose.msra.mxu0 0.0
    %1034 = vmatpush.xpose.msra.mxu0 0.0
    %1035 = vmatpush.xpose.msra.mxu0 0.0
    %1036 = vmatpush.xpose.msra.mxu0 0.0
    %1037 = vmatpush.xpose.msra.mxu0 0.0
    %1038 = vmatpush.xpose.msra.mxu0 0.0
    %1039 = vmatpush.xpose.msra.mxu0 0.0
    %1040 = vmatpush.xpose.msra.mxu0 0.0
    %1041 = vmatpush.xpose.msra.mxu0 0.0
    %1042 = vmatpush.xpose.msra.mxu0 0.0
    %1043 = vmatpush.xpose.msra.mxu0 0.0
    %1044 = vmatpush.xpose.msra.mxu0 0.0
    %1045 = vmatpush.xpose.msra.mxu0 0.0
    %1046 = vmatpush.xpose.msra.mxu0 %v1029
    %1047 = vmatmul.f32.gmra.mxu0 %v1027
    %v1048 = vpop.f32.mrf.mxu0
    %v1049 = vadd.f32 0.0, %v1048
    %1050 = vdwg.mxu0
    %v1051 = vmul.f32 %v1049, 0.35355338
    %v1052 = vadd.f32 %v1051, %v326
    %v1053 = vsel %vm411, %v1052, -inf
    %1054 = vmax.xlane.f32.xlu0 %v1053
    %v1055 = vpop.xlane.xlu0 %1054
    %v1056 = vsub.f32 %v1052, %v1055
    %v1057 = vmul.f32 %v1056, 1.442695
    %v1058 = vpow.pop %v1057
    %v1059 = vsel %vm411, %v1058, 0.0
    %1060 = vadd.xlane.f32.xlu0 %v1059
    %v1061 = vpop.xlane.xlu0 %1060
    %v1062 = vrcp.pop %v1061
    %v1063 = vmul.f32 %v1058, %v1062
    %1064 = vrot.lane.b32.xlu0 %v955, 88
    %v1065 = vpop.permute.xlu0 %1064
    %v1068 = vsel %vm411, %v1063, 0
    %1070 = vmatpush.msra.mxu0 0.0
    %1071 = vmatpush.msra.mxu0 0.0
    %1072 = vmatpush.msra.mxu0 0.0
    %1073 = vmatpush.msra.mxu0 0.0
    %1074 = vmatpush.msra.mxu0 0.0
    %1075 = vmatpush.msra.mxu0 0.0
    %1076 = vmatpush.msra.mxu0 0.0
    %1077 = vmatpush.msra.mxu0 0.0
    %1078 = vmatpush.msra.mxu0 0.0
    %1079 = vmatpush.msra.mxu0 0.0
    %1080 = vmatpush.msra.mxu0 0.0
    %1081 = vmatpush.msra.mxu0 0.0
    %1082 = vmatpush.msra.mxu0 0.0
    %1083 = vmatpush.msra.mxu0 0.0
    %1084 = vmatpush.msra.mxu0 0.0
    %1085 = vmatpush.msra.mxu0 %v1065
    %1086 = vmatmul.f32.gmra.mxu0 %v1068
    %v1087 = vpop.f32.mrf.mxu0
    %v1088 = vadd.f32 0.0, %v1087
    %1089 = vdwg.mxu0
    %1091 = vrot.lane.b32.xlu0 %v1088, 8
    %v1092 = vpop.permute.xlu0 %1091
    %v1094 = vsel %vm411, %v1021, %v1092
    %1096 = vrot.lane.b32.xlu0 %v956, 112
    %v1097 = vpop.permute.xlu0 %1096
    %v1098 = vsel %vm411, %v956, 0
    %v1100 = vsel %vm411, %v1097, 0
    %1102 = vmatpush.xpose.msra.mxu0 0.0
    %1103 = vmatpush.xpose.msra.mxu0 0.0
    %1104 = vmatpush.xpose.msra.mxu0 0.0
    %1105 = vmatpush.xpose.msra.mxu0 0.0
    %1106 = vmatpush.xpose.msra.mxu0 0.0
    %1107 = vmatpush.xpose.msra.mxu0 0.0
    %1108 = vmatpush.xpose.msra.mxu0 0.0
    %1109 = vmatpush.xpose.msra.mxu0 0.0
    %1110 = vmatpush.xpose.msra.mxu0 0.0
    %1111 = vmatpush.xpose.msra.mxu0 0.0
    %1112 = vmatpush.xpose.msra.mxu0 0.0
    %1113 = vmatpush.xpose.msra.mxu0 0.0
    %1114 = vmatpush.xpose.msra.mxu0 0.0
    %1115 = vmatpush.xpose.msra.mxu0 0.0
    %1116 = vmatpush.xpose.msra.mxu0 0.0
    %1117 = vmatpush.xpose.msra.mxu0 %v1100
    %1118 = vmatmul.f32.gmra.mxu0 %v1098
    %v1119 = vpop.f32.mrf.mxu0
    %v1120 = vadd.f32 0.0, %v1119
    %1121 = vdwg.mxu0
    %v1122 = vmul.f32 %v1120, 0.35355338
    %v1123 = vadd.f32 %v1122, %v326
    %v1124 = vsel %vm411, %v1123, -inf
    %1125 = vmax.xlane.f32.xlu0 %v1124
    %v1126 = vpop.xlane.xlu0 %1125
    %v1127 = vsub.f32 %v1123, %v1126
    %v1128 = vmul.f32 %v1127, 1.442695
    %v1129 = vpow.pop %v1128
    %v1130 = vsel %vm411, %v1129, 0.0
    %1131 = vadd.xlane.f32.xlu0 %v1130
    %v1132 = vpop.xlane.xlu0 %1131
    %v1133 = vrcp.pop %v1132
    %v1134 = vmul.f32 %v1129, %v1133
    %1135 = vrot.lane.b32.xlu0 %v956, 96
    %v1136 = vpop.permute.xlu0 %1135
    %v1139 = vsel %vm411, %v1134, 0
    %1141 = vmatpush.msra.mxu0 0.0
    %1142 = vmatpush.msra.mxu0 0.0
    %1143 = vmatpush.msra.mxu0 0.0
    %1144 = vmatpush.msra.mxu0 0.0
    %1145 = vmatpush.msra.mxu0 0.0
    %1146 = vmatpush.msra.mxu0 0.0
    %1147 = vmatpush.msra.mxu0 0.0
    %1148 = vmatpush.msra.mxu0 0.0
    %1149 = vmatpush.msra.mxu0 0.0
    %1150 = vmatpush.msra.mxu0 0.0
    %1151 = vmatpush.msra.mxu0 0.0
    %1152 = vmatpush.msra.mxu0 0.0
    %1153 = vmatpush.msra.mxu0 0.0
    %1154 = vmatpush.msra.mxu0 0.0
    %1155 = vmatpush.msra.mxu0 0.0
    %1156 = vmatpush.msra.mxu0 %v1136
    %1157 = vmatmul.f32.gmra.mxu0 %v1139
    %v1158 = vpop.f32.mrf.mxu0
    %v1159 = vadd.f32 0.0, %v1158
    %1160 = vdwg.mxu0
    %1161 = vrot.lane.b32.xlu0 %v956, 120
    %v1162 = vpop.permute.xlu0 %1161
    %1163 = vrot.lane.b32.xlu0 %v956, 104
    %v1164 = vpop.permute.xlu0 %1163
    %v1165 = vsel %vm411, %v1162, 0
    %v1167 = vsel %vm411, %v1164, 0
    %1169 = vmatpush.xpose.msra.mxu0 0.0
    %1170 = vmatpush.xpose.msra.mxu0 0.0
    %1171 = vmatpush.xpose.msra.mxu0 0.0
    %1172 = vmatpush.xpose.msra.mxu0 0.0
    %1173 = vmatpush.xpose.msra.mxu0 0.0
    %1174 = vmatpush.xpose.msra.mxu0 0.0
    %1175 = vmatpush.xpose.msra.mxu0 0.0
    %1176 = vmatpush.xpose.msra.mxu0 0.0
    %1177 = vmatpush.xpose.msra.mxu0 0.0
    %1178 = vmatpush.xpose.msra.mxu0 0.0
    %1179 = vmatpush.xpose.msra.mxu0 0.0
    %1180 = vmatpush.xpose.msra.mxu0 0.0
    %1181 = vmatpush.xpose.msra.mxu0 0.0
    %1182 = vmatpush.xpose.msra.mxu0 0.0
    %1183 = vmatpush.xpose.msra.mxu0 0.0
    %1184 = vmatpush.xpose.msra.mxu0 %v1167
    %1185 = vmatmul.f32.gmra.mxu0 %v1165
    %v1186 = vpop.f32.mrf.mxu0
    %v1187 = vadd.f32 0.0, %v1186
    %1188 = vdwg.mxu0
    %v1189 = vmul.f32 %v1187, 0.35355338
    %v1190 = vadd.f32 %v1189, %v326
    %v1191 = vsel %vm411, %v1190, -inf
    %1192 = vmax.xlane.f32.xlu0 %v1191
    %v1193 = vpop.xlane.xlu0 %1192
    %v1194 = vsub.f32 %v1190, %v1193
    %v1195 = vmul.f32 %v1194, 1.442695
    %v1196 = vpow.pop %v1195
    %v1197 = vsel %vm411, %v1196, 0.0
    %1198 = vadd.xlane.f32.xlu0 %v1197
    %v1199 = vpop.xlane.xlu0 %1198
    %v1200 = vrcp.pop %v1199
    %v1201 = vmul.f32 %v1196, %v1200
    %1202 = vrot.lane.b32.xlu0 %v956, 88
    %v1203 = vpop.permute.xlu0 %1202
    %v1206 = vsel %vm411, %v1201, 0
    %1208 = vmatpush.msra.mxu0 0.0
    %1209 = vmatpush.msra.mxu0 0.0
    %1210 = vmatpush.msra.mxu0 0.0
    %1211 = vmatpush.msra.mxu0 0.0
    %1212 = vmatpush.msra.mxu0 0.0
    %1213 = vmatpush.msra.mxu0 0.0
    %1214 = vmatpush.msra.mxu0 0.0
    %1215 = vmatpush.msra.mxu0 0.0
    %1216 = vmatpush.msra.mxu0 0.0
    %1217 = vmatpush.msra.mxu0 0.0
    %1218 = vmatpush.msra.mxu0 0.0
    %1219 = vmatpush.msra.mxu0 0.0
    %1220 = vmatpush.msra.mxu0 0.0
    %1221 = vmatpush.msra.mxu0 0.0
    %1222 = vmatpush.msra.mxu0 0.0
    %1223 = vmatpush.msra.mxu0 %v1203
    %1224 = vmatmul.f32.gmra.mxu0 %v1206
    %v1225 = vpop.f32.mrf.mxu0
    %v1226 = vadd.f32 0.0, %v1225
    %1227 = vdwg.mxu0
    %1229 = vrot.lane.b32.xlu0 %v1226, 8
    %v1230 = vpop.permute.xlu0 %1229
    %v1232 = vsel %vm411, %v1159, %v1230
    %v1233 = vld [vmem:[%s37] sm:$0xff]
    %v1234 = vld [vmem:[%s37 + $0x8] sm:$0xff]
    %v1235 = vld [vmem:[#allocation20] sm:$0x1]
    %v1237 = vperm.slane %v1235, 0
    %v1240 = vsel %vm376, %v1094, 0
    %v1243 = vsel %vm376, %v1232, 0
    %1245 = vmatpush.msra.mxu0 0.0
    %1246 = vmatpush.msra.mxu0 0.0
    %1247 = vmatpush.msra.mxu0 0.0
    %1248 = vmatpush.msra.mxu0 0.0
    %1249 = vmatpush.msra.mxu0 0.0
    %1250 = vmatpush.msra.mxu0 0.0
    %1251 = vmatpush.msra.mxu0 0.0
    %1252 = vmatpush.msra.mxu0 0.0
    %1253 = vmatpush.msra.mxu0 0.0
    %1254 = vmatpush.msra.mxu0 0.0
    %1255 = vmatpush.msra.mxu0 0.0
    %1256 = vmatpush.msra.mxu0 0.0
    %1257 = vmatpush.msra.mxu0 0.0
    %1258 = vmatpush.msra.mxu0 0.0
    %1259 = vmatpush.msra.mxu0 %v1234
    %1260 = vmatpush.msra.mxu0 %v1233
    %1261 = vmatmul.f32.gmra.mxu0 %v1240
    %v1262 = vpop.f32.mrf.mxu0
    %v1263 = vadd.f32 %v1237, %v1262
    %1264 = vmatmul.f32.gmra.mxu0 %v1243
    %v1265 = vpop.f32.mrf.mxu0
    %v1266 = vadd.f32 %v1237, %v1265
    %1267 = vdwg.mxu0
    %v1268 = vmax.f32 %v1263, 0.0
    %v1269 = vmax.f32 %v1266, 0.0
    %v1270 = vadd.f32 %v918, %v1268
    %v1271 = vadd.f32 %v919, %v1269
    %v1272 = vsel %vm376, %v1270, 0.0
    %1273 = vadd.xlane.f32.xlu0 %v1272
    %v1274 = vpop.xlane.xlu0 %1273
    %v1275 = vsel %vm376, %v1271, 0.0
    %1276 = vadd.xlane.f32.xlu0 %v1275
    %v1277 = vpop.xlane.xlu0 %1276
    %v1278 = vmul.f32 %v1274, %v736
    %v1279 = vmul.f32 %v1277, %v736
    %v1280 = vsub.f32 %v1270, %v1278
    %v1281 = vsub.f32 %v1271, %v1279
    %v1282 = vmul.f32 %v1280, %v1280
    %v1283 = vmul.f32 %v1281, %v1281
    %v1284 = vsel %vm376, %v1282, 0.0
    %1285 = vadd.xlane.f32.xlu0 %v1284
    %v1286 = vpop.xlane.xlu0 %1285
    %v1287 = vsel %vm376, %v1283, 0.0
    %1288 = vadd.xlane.f32.xlu0 %v1287
    %v1289 = vpop.xlane.xlu0 %1288
    %v1290 = vmul.f32 %v1286, %v736
    %v1291 = vmul.f32 %v1289, %v736
    %v1292 = vadd.f32 %v1290, 1e-05
    %v1293 = vadd.f32 %v1291, 1e-05
    %v1294 = vrsqrt.pop %v1292
    %v1295 = vmul.f32 %v1294, %v1292
    %v1296 = vmul.f32 %v1295, %v1294
    %v1297 = vmul.f32 0.5, %v1296
    %v1298 = vsub.f32 1.5, %v1297
    %v1299 = vmul.f32 %v1294, %v1298
    %vm1300 = vweird.f32 %v1292
    %vm1301 = vweird.f32 %v1294
    %vm1302 = vmor %vm1300, %vm1301
    %v1303 = vsel %vm1302, %v1294, %v1299
    %v1304 = vrsqrt.pop %v1293
    %v1305 = vmul.f32 %v1304, %v1293
    %v1306 = vmul.f32 %v1305, %v1304
    %v1307 = vmul.f32 0.5, %v1306
    %v1308 = vsub.f32 1.5, %v1307
    %v1309 = vmul.f32 %v1304, %v1308
    %vm1310 = vweird.f32 %v1293
    %vm1311 = vweird.f32 %v1304
    %vm1312 = vmor %vm1310, %vm1311
    %v1313 = vsel %vm1312, %v1304, %v1309
    %v1314 = vmul.f32 %v1280, %v1303
    %v1315 = vmul.f32 %v1281, %v1313
    %v1316 = vld [vmem:[%s49] sm:$0x1]
    %v1318 = vperm.slane %v1316, 0
    %v1320 = vmul.f32 %v1314, %v1318
    %v1321 = vmul.f32 %v1315, %v1318
    %v1322 = vld [vmem:[%s51] sm:$0x1]
    %v1324 = vperm.slane %v1322, 0
    %v1326 = vadd.f32 %v1320, %v1324
    %v1327 = vadd.f32 %v1321, %v1324
    %v1328 = vld [vmem:[#allocation22] sm:$0xff]
    %v1329 = vld [vmem:[#allocation22 + $0x8] sm:$0xff]
    %v1330 = vld [vmem:[%s43] sm:$0x1]
    %v1332 = vperm.slane %v1330, 0
    %v1335 = vsel %vm376, %v1326, 0
    %v1338 = vsel %vm376, %v1327, 0
    %1340 = vmatpush.msra.mxu0 0.0
    %1341 = vmatpush.msra.mxu0 0.0
    %1342 = vmatpush.msra.mxu0 0.0
    %1343 = vmatpush.msra.mxu0 0.0
    %1344 = vmatpush.msra.mxu0 0.0
    %1345 = vmatpush.msra.mxu0 0.0
    %1346 = vmatpush.msra.mxu0 0.0
    %1347 = vmatpush.msra.mxu0 0.0
    %1348 = vmatpush.msra.mxu0 0.0
    %1349 = vmatpush.msra.mxu0 0.0
    %1350 = vmatpush.msra.mxu0 0.0
    %1351 = vmatpush.msra.mxu0 0.0
    %1352 = vmatpush.msra.mxu0 0.0
    %1353 = vmatpush.msra.mxu0 0.0
    %1354 = vmatpush.msra.mxu0 %v1329
    %1355 = vmatpush.msra.mxu0 %v1328
    %1356 = vmatmul.f32.gmra.mxu0 %v1335
    %v1357 = vpop.f32.mrf.mxu0
    %v1358 = vadd.f32 %v1332, %v1357
    %1359 = vmatmul.f32.gmra.mxu0 %v1338
    %v1360 = vpop.f32.mrf.mxu0
    %v1361 = vadd.f32 %v1332, %v1360
    %1362 = vdwg.mxu0
    %v1363 = vmax.f32 %v1358, 0.0
    %v1364 = vmax.f32 %v1361, 0.0
    %v1365 = vld [vmem:[%s45] sm:$0xff]
    %v1366 = vld [vmem:[%s45 + $0x8] sm:$0xff]
    %v1367 = vld [vmem:[%s45 + $0x10] sm:$0xff]
    %v1368 = vld [vmem:[%s45 + $0x18] sm:$0xff]
    %v1369 = vld [vmem:[%s47] sm:$0x1]
    %v1371 = vperm.slane %v1369, 0
    %v1374 = vsel %vm832, %v1363, 0
    %v1377 = vsel %vm832, %v1364, 0
    %1379 = vmatpush.msra.mxu0 0.0
    %1380 = vmatpush.msra.mxu0 0.0
    %1381 = vmatpush.msra.mxu0 0.0
    %1382 = vmatpush.msra.mxu0 0.0
    %1383 = vmatpush.msra.mxu0 0.0
    %1384 = vmatpush.msra.mxu0 0.0
    %1385 = vmatpush.msra.mxu0 0.0
    %1386 = vmatpush.msra.mxu0 0.0
    %1387 = vmatpush.msra.mxu0 0.0
    %1388 = vmatpush.msra.mxu0 0.0
    %1389 = vmatpush.msra.mxu0 0.0
    %1390 = vmatpush.msra.mxu0 0.0
    %1391 = vmatpush.msra.mxu0 %v1368
    %1392 = vmatpush.msra.mxu0 %v1367
    %1393 = vmatpush.msra.mxu0 %v1366
    %1394 = vmatpush.msra.mxu0 %v1365
    %1395 = vmatmul.f32.gmra.mxu0 %v1374
    %v1396 = vpop.f32.mrf.mxu0
    %v1397 = vadd.f32 %v1371, %v1396
    %1398 = vmatmul.f32.gmra.mxu0 %v1377
    %v1399 = vpop.f32.mrf.mxu0
    %v1400 = vadd.f32 %v1371, %v1399
    %1401 = vdwg.mxu0
    %v1402 = vadd.f32 %v1326, %v1397
    %v1403 = vadd.f32 %v1327, %v1400
    %v1404 = vsel %vm376, %v1402, 0.0
    %1405 = vadd.xlane.f32.xlu0 %v1404
    %v1406 = vpop.xlane.xlu0 %1405
    %v1407 = vsel %vm376, %v1403, 0.0
    %1408 = vadd.xlane.f32.xlu0 %v1407
    %v1409 = vpop.xlane.xlu0 %1408
    %v1410 = vmul.f32 %v1406, %v736
    %v1411 = vmul.f32 %v1409, %v736
    %v1412 = vsub.f32 %v1402, %v1410
    %v1413 = vsub.f32 %v1403, %v1411
    %v1414 = vmul.f32 %v1412, %v1412
    %v1415 = vmul.f32 %v1413, %v1413
    %v1416 = vsel %vm376, %v1414, 0.0
    %1417 = vadd.xlane.f32.xlu0 %v1416
    %v1418 = vpop.xlane.xlu0 %1417
    %v1419 = vsel %vm376, %v1415, 0.0
    %1420 = vadd.xlane.f32.xlu0 %v1419
    %v1421 = vpop.xlane.xlu0 %1420
    %v1422 = vmul.f32 %v1418, %v736
    %v1423 = vmul.f32 %v1421, %v736
    %v1424 = vadd.f32 %v1422, 1e-05
    %v1425 = vadd.f32 %v1423, 1e-05
    %v1426 = vrsqrt.pop %v1424
    %v1427 = vmul.f32 %v1426, %v1424
    %v1428 = vmul.f32 %v1427, %v1426
    %v1429 = vmul.f32 0.5, %v1428
    %v1430 = vsub.f32 1.5, %v1429
    %v1431 = vmul.f32 %v1426, %v1430
    %vm1432 = vweird.f32 %v1424
    %vm1433 = vweird.f32 %v1426
    %vm1434 = vmor %vm1432, %vm1433
    %v1435 = vsel %vm1434, %v1426, %v1431
    %v1436 = vrsqrt.pop %v1425
    %v1437 = vmul.f32 %v1436, %v1425
    %v1438 = vmul.f32 %v1437, %v1436
    %v1439 = vmul.f32 0.5, %v1438
    %v1440 = vsub.f32 1.5, %v1439
    %v1441 = vmul.f32 %v1436, %v1440
    %vm1442 = vweird.f32 %v1425
    %vm1443 = vweird.f32 %v1436
    %vm1444 = vmor %vm1442, %vm1443
    %v1445 = vsel %vm1444, %v1436, %v1441
    %v1446 = vmul.f32 %v1412, %v1435
    %v1447 = vmul.f32 %v1413, %v1445
    %v1448 = vld [vmem:[%s53] sm:$0x1]
    %v1450 = vperm.slane %v1448, 0
    %v1452 = vmul.f32 %v1446, %v1450
    %v1453 = vmul.f32 %v1447, %v1450
    %v1454 = vld [vmem:[%s55] sm:$0x1]
    %v1456 = vperm.slane %v1454, 0
    %v1458 = vadd.f32 %v1452, %v1456
    %v1459 = vadd.f32 %v1453, %v1456
    %v1460 = vsel %vm376, %v1458, 0.0
    %v1461 = vrot.slane %v1460, 4
    %v1462 = vadd.f32 %v1460, %v1461
    %v1463 = vrot.slane %v1462, 2
    %v1464 = vadd.f32 %v1462, %v1463
    %v1465 = vrot.slane %v1464, 1
    %v1466 = vadd.f32 %v1464, %v1465
    %v1467 = vrcp.pop 8.0
    %v1468 = vmul.f32 8.0, %v1467
    %v1469 = vsub.f32 1.0, %v1468
    %v1470 = vmul.f32 %v1467, %v1469
    %v1471 = vadd.f32 %v1467, %v1470
    %vm1472 = vweird.f32 %v1467
    %v1473 = vsel %vm1472, %v1467, %v1471
    %v1474 = vmul.f32 %v1466, %v1473
    %v1475 = vsel %vm376, %v1459, 0.0
    %v1476 = vrot.slane %v1475, 4
    %v1477 = vadd.f32 %v1475, %v1476
    %v1478 = vrot.slane %v1477, 2
    %v1479 = vadd.f32 %v1477, %v1478
    %v1480 = vrot.slane %v1479, 1
    %v1481 = vadd.f32 %v1479, %v1480
    %v1482 = vmul.f32 %v1481, %v1473
    %vm1483 = vcmask 1040384
    %v1484 = vsel %vm1483, %v1474, %v1482
    %v1485 = vld [vmem:[#allocation2] sm:$0x3]
    %1487 = vrot.lane.b32.xlu0 %v1485, 16
    %v1488 = vpop.permute.xlu0 %1487
    %v1490 = vsel %vm376, %v1484, %v1488
    %v1491 = vld [vmem:[%s57] sm:$0xff]
    %v1492 = vld [vmem:[%s57 + $0x8] sm:$0xff]
    %v1493 = vld [vmem:[%s57 + $0x10] sm:$0xf]
    %v1494 = vld [vmem:[%s59] sm:$0x1]
    %v1496 = vperm.slane %v1494, 0
    %vm1498 = vcmask 162816
    %v1500 = vsel %vm1498, %v1490, 0
    %vm1502 = vcmask 1043456
    %v1504 = vsel %vm1502, %v1493, 0
    %1506 = vmatpush.msra.mxu0 0.0
    %1507 = vmatpush.msra.mxu0 0.0
    %1508 = vmatpush.msra.mxu0 0.0
    %1509 = vmatpush.msra.mxu0 0.0
    %1510 = vmatpush.msra.mxu0 0.0
    %1511 = vmatpush.msra.mxu0 0.0
    %1512 = vmatpush.msra.mxu0 0.0
    %1513 = vmatpush.msra.mxu0 0.0
    %1514 = vmatpush.msra.mxu0 0.0
    %1515 = vmatpush.msra.mxu0 0.0
    %1516 = vmatpush.msra.mxu0 0.0
    %1517 = vmatpush.msra.mxu0 0.0
    %1518 = vmatpush.msra.mxu0 0.0
    %1519 = vmatpush.msra.mxu0 %v1504
    %1520 = vmatpush.msra.mxu0 %v1492
    %1521 = vmatpush.msra.mxu0 %v1491
    %1522 = vmatmul.f32.gmra.mxu0 %v1500
    %v1523 = vpop.f32.mrf.mxu0
    %v1524 = vadd.f32 %v1496, %v1523
    %1525 = vdwg.mxu0
    %v1526 = vmax.f32 %v1524, 0.0
    %v1527 = vld [vmem:[%s61] sm:$0xff]
    %v1528 = vld [vmem:[%s61 + $0x8] sm:$0xff]
    %v1529 = vld [vmem:[%s61 + $0x10] sm:$0xff]
    %v1530 = vld [vmem:[%s61 + $0x18] sm:$0xff]
    %v1531 = vld [vmem:[%s63] sm:$0x1]
    %v1533 = vperm.slane %v1531, 0
    %v1536 = vsel %vm832, %v1526, 0
    %1538 = vmatpush.msra.mxu0 0.0
    %1539 = vmatpush.msra.mxu0 0.0
    %1540 = vmatpush.msra.mxu0 0.0
    %1541 = vmatpush.msra.mxu0 0.0
    %1542 = vmatpush.msra.mxu0 0.0
    %1543 = vmatpush.msra.mxu0 0.0
    %1544 = vmatpush.msra.mxu0 0.0
    %1545 = vmatpush.msra.mxu0 0.0
    %1546 = vmatpush.msra.mxu0 0.0
    %1547 = vmatpush.msra.mxu0 0.0
    %1548 = vmatpush.msra.mxu0 0.0
    %1549 = vmatpush.msra.mxu0 0.0
    %1550 = vmatpush.msra.mxu0 %v1530
    %1551 = vmatpush.msra.mxu0 %v1529
    %1552 = vmatpush.msra.mxu0 %v1528
    %1553 = vmatpush.msra.mxu0 %v1527
    %1554 = vmatmul.f32.gmra.mxu0 %v1536
    %v1555 = vpop.f32.mrf.mxu0
    %v1556 = vadd.f32 %v1533, %v1555
    %1557 = vdwg.mxu0
    %v1558 = vmax.f32 %v1556, 0.0
    %v1559 = vld [vmem:[%s65] sm:$0xff]
    %v1560 = vld [vmem:[%s65 + $0x8] sm:$0xff]
    %v1561 = vld [vmem:[%s65 + $0x10] sm:$0xff]
    %v1562 = vld [vmem:[%s65 + $0x18] sm:$0xff]
    %v1563 = vld [vmem:[%s67] sm:$0x1]
    %v1565 = vperm.slane %v1563, 0
    %v1568 = vsel %vm832, %v1558, 0
    %1570 = vmatpush.msra.mxu0 0.0
    %1571 = vmatpush.msra.mxu0 0.0
    %1572 = vmatpush.msra.mxu0 0.0
    %1573 = vmatpush.msra.mxu0 0.0
    %1574 = vmatpush.msra.mxu0 0.0
    %1575 = vmatpush.msra.mxu0 0.0
    %1576 = vmatpush.msra.mxu0 0.0
    %1577 = vmatpush.msra.mxu0 0.0
    %1578 = vmatpush.msra.mxu0 0.0
    %1579 = vmatpush.msra.mxu0 0.0
    %1580 = vmatpush.msra.mxu0 0.0
    %1581 = vmatpush.msra.mxu0 0.0
    %1582 = vmatpush.msra.mxu0 %v1562
    %1583 = vmatpush.msra.mxu0 %v1561
    %1584 = vmatpush.msra.mxu0 %v1560
    %1585 = vmatpush.msra.mxu0 %v1559
    %1586 = vmatmul.f32.gmra.mxu0 %v1568
    %v1587 = vpop.f32.mrf.mxu0
    %v1588 = vadd.f32 %v1565, %v1587
    %1589 = vdwg.mxu0
    %vm1590 = vcmask 17408
    %1591 = vst.msk [vmem:[#allocation23] sm:$0x3] %vm1590, %v1588
    // Predicated region
    $region190: #{tpu_custom_call.1} parent=1 // pred_check
      _
    $region191: #{tpu_custom_call.1} parent=1 // pred_check_branch
      %1593 = sbr.rel (0) target = $region193
    $region192: #{tpu_custom_call.1} parent=1 // pred_region
      %1595 = vsyncadd [#allocation4], 0
      %s1597 = sshll.u32 [#allocation23], 4
      %s1598 = int_to_ptr.vmem [resolvable:$true] %s1597
      %s1599 = sshll.u32 %s69, 4
      %s1600 = int_to_ptr.hbm [resolvable:$true] %s1599
      %1602 = dma.vmem_to_hbm [thread:$0]  %s1598, 32, %s1600, [#allocation4]
    $region193: #{tpu_custom_call.1} parent=1 // pred_fallthru
      _
    // Predicated region
    $region194: #{tpu_custom_call.1} parent=1 // pred_check
      _
    $region195: #{tpu_custom_call.1} parent=1 // pred_check_branch
      %1604 = sbr.rel (0) target = $region197
    $region196: #{tpu_custom_call.1} parent=1 // pred_region
      %1606 = dma.done [#allocation4], 32
    $region197: #{tpu_custom_call.1} parent=1 // pred_fallthru
      _
    %1607 = vsyncpa [#allocation3], 1
    %1608 = vsyncpa [#allocation6], 1
    %1609 = vsyncpa [#allocation9], 1
    %1610 = vsyncpa [#allocation12], 1
    %1611 = vsyncpa [#allocation15], 1
    %1612 = vsyncpa [#allocation18], 1
    %1613 = vsyncpa [#allocation21], 1
    %1614 = vsyncpa [#allocation4], 1

</llo_original>
